<compile_context>
chip_gen: v7x
topology: tpu7x:2x2x1
jax: 0.10.0
libtpu: 0.0.40
codegen_flags: <defaults>
</compile_context>

<pallas_src>
import functools

import jax
import jax.numpy as jnp
import numpy as np
from jax.experimental import pallas as pl
from jax.experimental.pallas import tpu as pltpu

_BIAS_ROWS = 8        # row 0 == 1.0 (bias row), rows 1..7 == 0 (keeps slabs 8-aligned)


def _round_up(v, m):
    return (v + m - 1) // m * m


def _tap_shift(t, width):
    ky, kx = divmod(t, 3)
    return (ky - 1) * width + (kx - 1)


# ----------------------------------------------------------------------------
# Fused kernel: the full dense block for B lane-packed images per grid step.
# ----------------------------------------------------------------------------
def _dense_block_kernel(x_ref, w_ref, m_ref, o_ref, buf_ref, *,
                        n_convs, c0, k, width, lanes):
    # x_ref:   (1, c0, lanes)    B images side by side on lanes, channels padded to c0
    # w_ref:   (n_convs, k, R)   packed weights; column layout matches buf_ref rows
    # m_ref:   (9, lanes)        per-tap border masks (padding=1), tiled per image
    # o_ref:   (1, k, lanes)     result6
    # buf_ref: (R, lanes)        VMEM im2col scratch:
    #                            [ bias slab | 9 taps of x | 9 taps of r1 | ... | 9 taps of r5 ]

    # Bias slab: row 0 = 1.0 (multiplies the bias column of the weights), rows 1..7 = 0.
    row = jax.lax.broadcasted_iota(jnp.int32, (_BIAS_ROWS, lanes), 0)
    buf_ref[0:_BIAS_ROWS, :] = (row == 0).astype(jnp.float32)

    masks = [m_ref[t:t + 1, :] for t in range(9)]          # hoisted: 9 x (1, lanes)

    def write_slab(vals, base, rows):
        # Store the 9 rolled + border-masked copies of `vals` ((rows, lanes)).
        # Wrapped lanes (incl. cross-image wrap) are provably zeroed by the border mask.
        for t in range(9):
            s = _tap_shift(t, width)
            if s == 0:
                shifted = vals                              # center tap: mask is all ones
            else:
                shifted = pltpu.roll(vals, shift=(-s) % lanes, axis=1) * masks[t]
            buf_ref[base + t * rows: base + (t + 1) * rows, :] = shifted

    x_base = _BIAS_ROWS
    r_base = _BIAS_ROWS + 9 * c0
    write_slab(x_ref[0], x_base, c0)                        # input slab, once per step

    for i in range(n_convs):
        w_i = r_base + i * 9 * k                            # static, 8-aligned prefix width
        r = jnp.dot(w_ref[i, :, 0:w_i], buf_ref[0:w_i, :],
                    preferred_element_type=jnp.float32)     # (k, lanes); bias folded in
        if i + 1 < n_convs:
            write_slab(r, r_base + i * 9 * k, k)            # feeds the later convs
        else:
            o_ref[0] = r.astype(o_ref.dtype)


# ----------------------------------------------------------------------------
# Wrapper.
# ----------------------------------------------------------------------------
def _make_tap_masks(h, w):
    p = jnp.arange(h * w, dtype=jnp.int32)
    y, x = p // w, p % w
    rows = []
    for t in range(9):
        ky, kx = divmod(t, 3)
        dy, dx = ky - 1, kx - 1
        ok = (y + dy >= 0) & (y + dy < h) & (x + dx >= 0) & (x + dx < w)
        rows.append(ok.astype(jnp.float32))
    return jnp.stack(rows, axis=0)                          # (9, h*w)


@functools.partial(jax.jit, static_argnames=("images_per_step",))
def one_block_forward(x_nchw, w_packed, *, images_per_step=1):
    N, C, H, W = x_nchw.shape
    n_convs, k, R = w_packed.shape
    assert k % 8 == 0, "growth rate k must be a multiple of 8 for this kernel"
    c0 = _round_up(C, 8)
    assert R == _BIAS_ROWS + 9 * c0 + (n_convs - 1) * 9 * k, "weight packing mismatch"
    hw = H * W
    B = images_per_step
    G = pl.cdiv(N, B)
    n_pad = G * B
    lanes = B * hw

    # NCHW -> (G, c0, B*hw): B images side by side on the lane axis.
    x = x_nchw.reshape(N, C, hw)
    x = jnp.pad(x, ((0, n_pad - N), (0, c0 - C), (0, 0)))
    x = x.reshape(G, B, c0, hw).transpose(0, 2, 1, 3).reshape(G, c0, lanes)

    masks = jnp.tile(_make_tap_masks(H, W), (1, B))         # (9, lanes)

    kernel = functools.partial(
        _dense_block_kernel, n_convs=n_convs, c0=c0, k=k, width=W, lanes=lanes)

    grid_spec = pltpu.PrefetchScalarGridSpec(
        num_scalar_prefetch=0,
        grid=(G,),
        in_specs=[
            pl.BlockSpec((1, c0, lanes), lambda g: (g, 0, 0)),
            pl.BlockSpec((n_convs, k, R), lambda g: (0, 0, 0)),
            pl.BlockSpec((9, lanes), lambda g: (0, 0)),
        ],
        out_specs=pl.BlockSpec((1, k, lanes), lambda g: (g, 0, 0)),
        scratch_shapes=[pltpu.VMEM((R, lanes), jnp.float32)],
    )

    out = pl.pallas_call(
        kernel,
        out_shape=jax.ShapeDtypeStruct((G, k, lanes), jnp.float32),
        grid_spec=grid_spec,
        compiler_params=pltpu.CompilerParams(
            dimension_semantics=("parallel",)),
    )(x, w_packed, masks)

    out = out.reshape(G, k, B, hw).transpose(0, 2, 1, 3).reshape(n_pad, k, hw)
    return out[:N].reshape(N, k, H, W)


# ----------------------------------------------------------------------------
# Parameter init (PyTorch-Conv2d-like uniform bounds) and packing.
# ----------------------------------------------------------------------------
def init_one_block_params(key, k, first_channel):
    params = []
    in_channels = [first_channel + i * k for i in range(6)]
    for cin in in_channels:
        key, kw, kb = jax.random.split(key, 3)
        bound = 1.0 / float(np.sqrt(cin * 3 * 3))
        w = jax.random.uniform(kw, (k, cin, 3, 3), jnp.float32, -bound, bound)
        b = jax.random.uniform(kb, (k,), jnp.float32, -bound, bound)
        params.append((w, b))
    return params


def pack_one_block_params(params, k, first_channel):
    """Pack per-conv OIHW weights + biases into (n_convs, k, R) matching the im2col
    scratch rows: [bias | 9 taps x c0 (input) | 9 taps x k (r1) | ... | 9 taps x k (r5)]."""
    n_convs = len(params)
    assert k % 8 == 0
    c0 = _round_up(first_channel, 8)
    R = _BIAS_ROWS + 9 * c0 + (n_convs - 1) * 9 * k
    wp = np.zeros((n_convs, k, R), np.float32)
    for i, (w, b) in enumerate(params):
        w = np.asarray(w, np.float32)                       # (k, cin, 3, 3)
        wp[i, :, 0] = np.asarray(b, np.float32)             # bias column (buf row 0 == 1)
        cin = w.shape[1]
        for t in range(9):
            ky, kx = divmod(t, 3)
            for c in range(cin):
                if c < first_channel:                       # input-image channel
                    col = _BIAS_ROWS + t * c0 + c
                else:                                       # channel produced by conv j
                    j, o = divmod(c - first_channel, k)
                    col = _BIAS_ROWS + 9 * c0 + (j * 9 + t) * k + o
                wp[i, :, col] = w[:, c, ky, kx]
    return jnp.asarray(wp)


# ----------------------------------------------------------------------------
# Independent NumPy reference of the PyTorch module (for the sanity check).
# ----------------------------------------------------------------------------
def _np_conv3x3(x, w, b):
    N, C, H, W = x.shape
    K = w.shape[0]
    xp = np.pad(x, ((0, 0), (0, 0), (1, 1), (1, 1)))
    out = np.zeros((N, K, H, W), np.float64)
    for ky in range(3):
        for kx in range(3):
            patch = xp[:, :, ky:ky + H, kx:kx + W]
            out += np.einsum("nchw,kc->nkhw", patch, w[:, :, ky, kx])
    return out + b[None, :, None, None]


def _np_one_block_ref(x, params):
    feats = x
    res = None
    for (w, b) in params:
        res = _np_conv3x3(feats, np.asarray(w, np.float64), np.asarray(b, np.float64))
        feats = np.concatenate([feats, res], axis=1)
    return res


if __name__ == "__main__":
    key = jax.random.PRNGKey(0)
    k_growth, first_channel = 8, 4
    N, H, W = 2, 16, 16

    key, kx, kparam = jax.random.split(key, 3)
    x = jax.random.normal(kx, (N, first_channel, H, W), jnp.float32)
    params = init_one_block_params(kparam, k_growth, first_channel)

    # Quantize test data to bf16-representable f32 values: the check then isolates
    # kernel/packing correctness from the MXU's f32 pass strategy across TPU
    # generations; remaining difference vs. the f64 reference is only f32
    # accumulation order (~1e-6), so a tight tolerance is safe.
    q = lambda a: jnp.asarray(a, jnp.float32).astype(jnp.bfloat16).astype(jnp.float32)
    x = q(x)
    params = [(q(w), q(b)) for (w, b) in params]

    w_packed = pack_one_block_params(params, k_growth, first_channel)

    # images_per_step packs images on the lane axis; keep >= 2 grid steps (v7x megacore).
    out = one_block_forward(x, w_packed, images_per_step=max(1, N // 2))
    jax.block_until_ready(out)

    assert out.shape == (N, k_growth, H, W), out.shape
    assert out.dtype == jnp.float32

    ref = _np_one_block_ref(np.asarray(x, np.float64), params)
    np.testing.assert_allclose(np.asarray(out, np.float64), ref, rtol=1e-4, atol=1e-5)

    print("KERNEL_OK")
</pallas_src>

<mosaic_0001>
module attributes {stable_mosaic.version = 11 : i64} {
  func.func @_dense_block_kernel(%arg0: i32, %arg1: memref<1x8x256xf32, #tpu.memory_space<vmem>>, %arg2: memref<6x8x440xf32, #tpu.memory_space<vmem>>, %arg3: memref<9x256xf32, #tpu.memory_space<vmem>>, %arg4: memref<1x8x256xf32, #tpu.memory_space<vmem>>, %arg5: memref<440x256xf32, #tpu.memory_space<vmem>>) attributes {dimension_semantics = [#tpu.dimension_semantics<parallel>], iteration_bounds = array<i64: 2>, scalar_prefetch = 0 : i64, scratch_operands = 1 : i64, tpu.core_type = #tpu.core_type<tc>, window_params = [{transform_indices = @transform_0, window_bounds = array<i64: 1, 8, 256>}, {pipeline_mode = #tpu.pipeline_mode<synchronous>, transform_indices = @transform_1, window_bounds = array<i64: 6, 8, 440>}, {pipeline_mode = #tpu.pipeline_mode<synchronous>, transform_indices = @transform_2, window_bounds = array<i64: 9, 256>}, {transform_indices = @transform_3, window_bounds = array<i64: 1, 8, 256>}]} {
    %0 = tpu.iota {dimensions = array<i32: 0>} : vector<8x256xi32>
    %c0_i32 = arith.constant 0 : i32
    %1 = vector.broadcast %c0_i32 : i32 to vector<8x256xi32>
    %2 = arith.cmpi eq, %0, %1 : vector<8x256xi32>
    %3 = arith.extui %2 : vector<8x256xi1> to vector<8x256xi32>
    %4 = arith.sitofp %3 : vector<8x256xi32> to vector<8x256xf32>
    %c0 = arith.constant 0 : index
    %c0_0 = arith.constant 0 : index
    %5 = vector.load %arg5[%c0, %c0_0] : memref<440x256xf32, #tpu.memory_space<vmem>>, vector<8x256xf32>
    tpu.vector_store %arg5[%c0, %c0_0], %4 {strides = array<i32>} : memref<440x256xf32, #tpu.memory_space<vmem>>, vector<8x256xf32>,
    %c0_1 = arith.constant 0 : index
    %c0_2 = arith.constant 0 : index
    %6 = vector.load %arg3[%c0_1, %c0_2] : memref<9x256xf32, #tpu.memory_space<vmem>>, vector<1x256xf32>
    %c1 = arith.constant 1 : index
    %c0_3 = arith.constant 0 : index
    %7 = vector.load %arg3[%c1, %c0_3] : memref<9x256xf32, #tpu.memory_space<vmem>>, vector<1x256xf32>
    %c2 = arith.constant 2 : index
    %c0_4 = arith.constant 0 : index
    %8 = vector.load %arg3[%c2, %c0_4] : memref<9x256xf32, #tpu.memory_space<vmem>>, vector<1x256xf32>
    %c3 = arith.constant 3 : index
    %c0_5 = arith.constant 0 : index
    %9 = vector.load %arg3[%c3, %c0_5] : memref<9x256xf32, #tpu.memory_space<vmem>>, vector<1x256xf32>
    %c5 = arith.constant 5 : index
    %c0_6 = arith.constant 0 : index
    %10 = vector.load %arg3[%c5, %c0_6] : memref<9x256xf32, #tpu.memory_space<vmem>>, vector<1x256xf32>
    %c6 = arith.constant 6 : index
    %c0_7 = arith.constant 0 : index
    %11 = vector.load %arg3[%c6, %c0_7] : memref<9x256xf32, #tpu.memory_space<vmem>>, vector<1x256xf32>
    %c7 = arith.constant 7 : index
    %c0_8 = arith.constant 0 : index
    %12 = vector.load %arg3[%c7, %c0_8] : memref<9x256xf32, #tpu.memory_space<vmem>>, vector<1x256xf32>
    %c8 = arith.constant 8 : index
    %c0_9 = arith.constant 0 : index
    %13 = vector.load %arg3[%c8, %c0_9] : memref<9x256xf32, #tpu.memory_space<vmem>>, vector<1x256xf32>
    %c0_10 = arith.constant 0 : index
    %c0_11 = arith.constant 0 : index
    %c0_12 = arith.constant 0 : index
    %14 = vector.load %arg1[%c0_10, %c0_11, %c0_12] : memref<1x8x256xf32, #tpu.memory_space<vmem>>, vector<1x8x256xf32>
    %15 = vector.shape_cast %14 : vector<1x8x256xf32> to vector<8x256xf32>
    %c17_i32 = arith.constant 17 : i32
    %16 = tpu.dynamic_rotate %15 by %c17_i32 dim 1 : vector<8x256xf32>, i32 -> vector<8x256xf32>
    %17 = vector.broadcast %6 : vector<1x256xf32> to vector<8x256xf32>
    %18 = arith.mulf %16, %17 : vector<8x256xf32>
    %c8_13 = arith.constant 8 : index
    %c0_14 = arith.constant 0 : index
    %19 = vector.load %arg5[%c8_13, %c0_14] : memref<440x256xf32, #tpu.memory_space<vmem>>, vector<8x256xf32>
    tpu.vector_store %arg5[%c8_13, %c0_14], %18 {strides = array<i32>} : memref<440x256xf32, #tpu.memory_space<vmem>>, vector<8x256xf32>,
    %c16_i32 = arith.constant 16 : i32
    %20 = tpu.dynamic_rotate %15 by %c16_i32 dim 1 : vector<8x256xf32>, i32 -> vector<8x256xf32>
    %21 = vector.broadcast %7 : vector<1x256xf32> to vector<8x256xf32>
    %22 = arith.mulf %20, %21 : vector<8x256xf32>
    %c16 = arith.constant 16 : index
    %c0_15 = arith.constant 0 : index
    %23 = vector.load %arg5[%c16, %c0_15] : memref<440x256xf32, #tpu.memory_space<vmem>>, vector<8x256xf32>
    tpu.vector_store %arg5[%c16, %c0_15], %22 {strides = array<i32>} : memref<440x256xf32, #tpu.memory_space<vmem>>, vector<8x256xf32>,
    %c15_i32 = arith.constant 15 : i32
    %24 = tpu.dynamic_rotate %15 by %c15_i32 dim 1 : vector<8x256xf32>, i32 -> vector<8x256xf32>
    %25 = vector.broadcast %8 : vector<1x256xf32> to vector<8x256xf32>
    %26 = arith.mulf %24, %25 : vector<8x256xf32>
    %c24 = arith.constant 24 : index
    %c0_16 = arith.constant 0 : index
    %27 = vector.load %arg5[%c24, %c0_16] : memref<440x256xf32, #tpu.memory_space<vmem>>, vector<8x256xf32>
    tpu.vector_store %arg5[%c24, %c0_16], %26 {strides = array<i32>} : memref<440x256xf32, #tpu.memory_space<vmem>>, vector<8x256xf32>,
    %c1_i32 = arith.constant 1 : i32
    %28 = tpu.dynamic_rotate %15 by %c1_i32 dim 1 : vector<8x256xf32>, i32 -> vector<8x256xf32>
    %29 = vector.broadcast %9 : vector<1x256xf32> to vector<8x256xf32>
    %30 = arith.mulf %28, %29 : vector<8x256xf32>
    %c32 = arith.constant 32 : index
    %c0_17 = arith.constant 0 : index
    %31 = vector.load %arg5[%c32, %c0_17] : memref<440x256xf32, #tpu.memory_space<vmem>>, vector<8x256xf32>
    tpu.vector_store %arg5[%c32, %c0_17], %30 {strides = array<i32>} : memref<440x256xf32, #tpu.memory_space<vmem>>, vector<8x256xf32>,
    %c40 = arith.constant 40 : index
    %c0_18 = arith.constant 0 : index
    %32 = vector.load %arg5[%c40, %c0_18] : memref<440x256xf32, #tpu.memory_space<vmem>>, vector<8x256xf32>
    tpu.vector_store %arg5[%c40, %c0_18], %15 {strides = array<i32>} : memref<440x256xf32, #tpu.memory_space<vmem>>, vector<8x256xf32>,
    %c255_i32 = arith.constant 255 : i32
    %33 = tpu.dynamic_rotate %15 by %c255_i32 dim 1 : vector<8x256xf32>, i32 -> vector<8x256xf32>
    %34 = vector.broadcast %10 : vector<1x256xf32> to vector<8x256xf32>
    %35 = arith.mulf %33, %34 : vector<8x256xf32>
    %c48 = arith.constant 48 : index
    %c0_19 = arith.constant 0 : index
    %36 = vector.load %arg5[%c48, %c0_19] : memref<440x256xf32, #tpu.memory_space<vmem>>, vector<8x256xf32>
    tpu.vector_store %arg5[%c48, %c0_19], %35 {strides = array<i32>} : memref<440x256xf32, #tpu.memory_space<vmem>>, vector<8x256xf32>,
    %c241_i32 = arith.constant 241 : i32
    %37 = tpu.dynamic_rotate %15 by %c241_i32 dim 1 : vector<8x256xf32>, i32 -> vector<8x256xf32>
    %38 = vector.broadcast %11 : vector<1x256xf32> to vector<8x256xf32>
    %39 = arith.mulf %37, %38 : vector<8x256xf32>
    %c56 = arith.constant 56 : index
    %c0_20 = arith.constant 0 : index
    %40 = vector.load %arg5[%c56, %c0_20] : memref<440x256xf32, #tpu.memory_space<vmem>>, vector<8x256xf32>
    tpu.vector_store %arg5[%c56, %c0_20], %39 {strides = array<i32>} : memref<440x256xf32, #tpu.memory_space<vmem>>, vector<8x256xf32>,
    %c240_i32 = arith.constant 240 : i32
    %41 = tpu.dynamic_rotate %15 by %c240_i32 dim 1 : vector<8x256xf32>, i32 -> vector<8x256xf32>
    %42 = vector.broadcast %12 : vector<1x256xf32> to vector<8x256xf32>
    %43 = arith.mulf %41, %42 : vector<8x256xf32>
    %c64 = arith.constant 64 : index
    %c0_21 = arith.constant 0 : index
    %44 = vector.load %arg5[%c64, %c0_21] : memref<440x256xf32, #tpu.memory_space<vmem>>, vector<8x256xf32>
    tpu.vector_store %arg5[%c64, %c0_21], %43 {strides = array<i32>} : memref<440x256xf32, #tpu.memory_space<vmem>>, vector<8x256xf32>,
    %c239_i32 = arith.constant 239 : i32
    %45 = tpu.dynamic_rotate %15 by %c239_i32 dim 1 : vector<8x256xf32>, i32 -> vector<8x256xf32>
    %46 = vector.broadcast %13 : vector<1x256xf32> to vector<8x256xf32>
    %47 = arith.mulf %45, %46 : vector<8x256xf32>
    %c72 = arith.constant 72 : index
    %c0_22 = arith.constant 0 : index
    %48 = vector.load %arg5[%c72, %c0_22] : memref<440x256xf32, #tpu.memory_space<vmem>>, vector<8x256xf32>
    tpu.vector_store %arg5[%c72, %c0_22], %47 {strides = array<i32>} : memref<440x256xf32, #tpu.memory_space<vmem>>, vector<8x256xf32>,
    %c0_23 = arith.constant 0 : index
    %c0_24 = arith.constant 0 : index
    %c0_25 = arith.constant 0 : index
    %49 = vector.load %arg2[%c0_23, %c0_24, %c0_25] : memref<6x8x440xf32, #tpu.memory_space<vmem>>, vector<1x8x80xf32>
    %50 = vector.shape_cast %49 : vector<1x8x80xf32> to vector<8x80xf32>
    %c0_26 = arith.constant 0 : index
    %c0_27 = arith.constant 0 : index
    %51 = vector.load %arg5[%c0_26, %c0_27] : memref<440x256xf32, #tpu.memory_space<vmem>>, vector<80x256xf32>
    %cst = arith.constant dense<0.000000e+00> : vector<8x256xf32>
    %52 = tpu.matmul %50, %51, %cst {dimension_numbers = #tpu.dot_dimension_numbers<[1], [0], [0], [1], [0, 0, 1, 1], [], []>} : vector<8x80xf32>, vector<80x256xf32>, vector<8x256xf32> -> vector<8x256xf32>
    %c17_i32_28 = arith.constant 17 : i32
    %53 = tpu.dynamic_rotate %52 by %c17_i32_28 dim 1 : vector<8x256xf32>, i32 -> vector<8x256xf32>
    %54 = vector.broadcast %6 : vector<1x256xf32> to vector<8x256xf32>
    %55 = arith.mulf %53, %54 : vector<8x256xf32>
    %c80 = arith.constant 80 : index
    %c0_29 = arith.constant 0 : index
    %56 = vector.load %arg5[%c80, %c0_29] : memref<440x256xf32, #tpu.memory_space<vmem>>, vector<8x256xf32>
    tpu.vector_store %arg5[%c80, %c0_29], %55 {strides = array<i32>} : memref<440x256xf32, #tpu.memory_space<vmem>>, vector<8x256xf32>,
    %c16_i32_30 = arith.constant 16 : i32
    %57 = tpu.dynamic_rotate %52 by %c16_i32_30 dim 1 : vector<8x256xf32>, i32 -> vector<8x256xf32>
    %58 = vector.broadcast %7 : vector<1x256xf32> to vector<8x256xf32>
    %59 = arith.mulf %57, %58 : vector<8x256xf32>
    %c88 = arith.constant 88 : index
    %c0_31 = arith.constant 0 : index
    %60 = vector.load %arg5[%c88, %c0_31] : memref<440x256xf32, #tpu.memory_space<vmem>>, vector<8x256xf32>
    tpu.vector_store %arg5[%c88, %c0_31], %59 {strides = array<i32>} : memref<440x256xf32, #tpu.memory_space<vmem>>, vector<8x256xf32>,
    %c15_i32_32 = arith.constant 15 : i32
    %61 = tpu.dynamic_rotate %52 by %c15_i32_32 dim 1 : vector<8x256xf32>, i32 -> vector<8x256xf32>
    %62 = vector.broadcast %8 : vector<1x256xf32> to vector<8x256xf32>
    %63 = arith.mulf %61, %62 : vector<8x256xf32>
    %c96 = arith.constant 96 : index
    %c0_33 = arith.constant 0 : index
    %64 = vector.load %arg5[%c96, %c0_33] : memref<440x256xf32, #tpu.memory_space<vmem>>, vector<8x256xf32>
    tpu.vector_store %arg5[%c96, %c0_33], %63 {strides = array<i32>} : memref<440x256xf32, #tpu.memory_space<vmem>>, vector<8x256xf32>,
    %c1_i32_34 = arith.constant 1 : i32
    %65 = tpu.dynamic_rotate %52 by %c1_i32_34 dim 1 : vector<8x256xf32>, i32 -> vector<8x256xf32>
    %66 = vector.broadcast %9 : vector<1x256xf32> to vector<8x256xf32>
    %67 = arith.mulf %65, %66 : vector<8x256xf32>
    %c104 = arith.constant 104 : index
    %c0_35 = arith.constant 0 : index
    %68 = vector.load %arg5[%c104, %c0_35] : memref<440x256xf32, #tpu.memory_space<vmem>>, vector<8x256xf32>
    tpu.vector_store %arg5[%c104, %c0_35], %67 {strides = array<i32>} : memref<440x256xf32, #tpu.memory_space<vmem>>, vector<8x256xf32>,
    %c112 = arith.constant 112 : index
    %c0_36 = arith.constant 0 : index
    %69 = vector.load %arg5[%c112, %c0_36] : memref<440x256xf32, #tpu.memory_space<vmem>>, vector<8x256xf32>
    tpu.vector_store %arg5[%c112, %c0_36], %52 {strides = array<i32>} : memref<440x256xf32, #tpu.memory_space<vmem>>, vector<8x256xf32>,
    %c255_i32_37 = arith.constant 255 : i32
    %70 = tpu.dynamic_rotate %52 by %c255_i32_37 dim 1 : vector<8x256xf32>, i32 -> vector<8x256xf32>
    %71 = vector.broadcast %10 : vector<1x256xf32> to vector<8x256xf32>
    %72 = arith.mulf %70, %71 : vector<8x256xf32>
    %c120 = arith.constant 120 : index
    %c0_38 = arith.constant 0 : index
    %73 = vector.load %arg5[%c120, %c0_38] : memref<440x256xf32, #tpu.memory_space<vmem>>, vector<8x256xf32>
    tpu.vector_store %arg5[%c120, %c0_38], %72 {strides = array<i32>} : memref<440x256xf32, #tpu.memory_space<vmem>>, vector<8x256xf32>,
    %c241_i32_39 = arith.constant 241 : i32
    %74 = tpu.dynamic_rotate %52 by %c241_i32_39 dim 1 : vector<8x256xf32>, i32 -> vector<8x256xf32>
    %75 = vector.broadcast %11 : vector<1x256xf32> to vector<8x256xf32>
    %76 = arith.mulf %74, %75 : vector<8x256xf32>
    %c128 = arith.constant 128 : index
    %c0_40 = arith.constant 0 : index
    %77 = vector.load %arg5[%c128, %c0_40] : memref<440x256xf32, #tpu.memory_space<vmem>>, vector<8x256xf32>
    tpu.vector_store %arg5[%c128, %c0_40], %76 {strides = array<i32>} : memref<440x256xf32, #tpu.memory_space<vmem>>, vector<8x256xf32>,
    %c240_i32_41 = arith.constant 240 : i32
    %78 = tpu.dynamic_rotate %52 by %c240_i32_41 dim 1 : vector<8x256xf32>, i32 -> vector<8x256xf32>
    %79 = vector.broadcast %12 : vector<1x256xf32> to vector<8x256xf32>
    %80 = arith.mulf %78, %79 : vector<8x256xf32>
    %c136 = arith.constant 136 : index
    %c0_42 = arith.constant 0 : index
    %81 = vector.load %arg5[%c136, %c0_42] : memref<440x256xf32, #tpu.memory_space<vmem>>, vector<8x256xf32>
    tpu.vector_store %arg5[%c136, %c0_42], %80 {strides = array<i32>} : memref<440x256xf32, #tpu.memory_space<vmem>>, vector<8x256xf32>,
    %c239_i32_43 = arith.constant 239 : i32
    %82 = tpu.dynamic_rotate %52 by %c239_i32_43 dim 1 : vector<8x256xf32>, i32 -> vector<8x256xf32>
    %83 = vector.broadcast %13 : vector<1x256xf32> to vector<8x256xf32>
    %84 = arith.mulf %82, %83 : vector<8x256xf32>
    %c144 = arith.constant 144 : index
    %c0_44 = arith.constant 0 : index
    %85 = vector.load %arg5[%c144, %c0_44] : memref<440x256xf32, #tpu.memory_space<vmem>>, vector<8x256xf32>
    tpu.vector_store %arg5[%c144, %c0_44], %84 {strides = array<i32>} : memref<440x256xf32, #tpu.memory_space<vmem>>, vector<8x256xf32>,
    %c1_45 = arith.constant 1 : index
    %c0_46 = arith.constant 0 : index
    %c0_47 = arith.constant 0 : index
    %86 = vector.load %arg2[%c1_45, %c0_46, %c0_47] : memref<6x8x440xf32, #tpu.memory_space<vmem>>, vector<1x8x152xf32>
    %87 = vector.shape_cast %86 : vector<1x8x152xf32> to vector<8x152xf32>
    %c0_48 = arith.constant 0 : index
    %c0_49 = arith.constant 0 : index
    %88 = vector.load %arg5[%c0_48, %c0_49] : memref<440x256xf32, #tpu.memory_space<vmem>>, vector<152x256xf32>
    %cst_50 = arith.constant dense<0.000000e+00> : vector<8x256xf32>
    %89 = tpu.matmul %87, %88, %cst_50 {dimension_numbers = #tpu.dot_dimension_numbers<[1], [0], [0], [1], [0, 0, 1, 1], [], []>} : vector<8x152xf32>, vector<152x256xf32>, vector<8x256xf32> -> vector<8x256xf32>
    %c17_i32_51 = arith.constant 17 : i32
    %90 = tpu.dynamic_rotate %89 by %c17_i32_51 dim 1 : vector<8x256xf32>, i32 -> vector<8x256xf32>
    %91 = vector.broadcast %6 : vector<1x256xf32> to vector<8x256xf32>
    %92 = arith.mulf %90, %91 : vector<8x256xf32>
    %c152 = arith.constant 152 : index
    %c0_52 = arith.constant 0 : index
    %93 = vector.load %arg5[%c152, %c0_52] : memref<440x256xf32, #tpu.memory_space<vmem>>, vector<8x256xf32>
    tpu.vector_store %arg5[%c152, %c0_52], %92 {strides = array<i32>} : memref<440x256xf32, #tpu.memory_space<vmem>>, vector<8x256xf32>,
    %c16_i32_53 = arith.constant 16 : i32
    %94 = tpu.dynamic_rotate %89 by %c16_i32_53 dim 1 : vector<8x256xf32>, i32 -> vector<8x256xf32>
    %95 = vector.broadcast %7 : vector<1x256xf32> to vector<8x256xf32>
    %96 = arith.mulf %94, %95 : vector<8x256xf32>
    %c160 = arith.constant 160 : index
    %c0_54 = arith.constant 0 : index
    %97 = vector.load %arg5[%c160, %c0_54] : memref<440x256xf32, #tpu.memory_space<vmem>>, vector<8x256xf32>
    tpu.vector_store %arg5[%c160, %c0_54], %96 {strides = array<i32>} : memref<440x256xf32, #tpu.memory_space<vmem>>, vector<8x256xf32>,
    %c15_i32_55 = arith.constant 15 : i32
    %98 = tpu.dynamic_rotate %89 by %c15_i32_55 dim 1 : vector<8x256xf32>, i32 -> vector<8x256xf32>
    %99 = vector.broadcast %8 : vector<1x256xf32> to vector<8x256xf32>
    %100 = arith.mulf %98, %99 : vector<8x256xf32>
    %c168 = arith.constant 168 : index
    %c0_56 = arith.constant 0 : index
    %101 = vector.load %arg5[%c168, %c0_56] : memref<440x256xf32, #tpu.memory_space<vmem>>, vector<8x256xf32>
    tpu.vector_store %arg5[%c168, %c0_56], %100 {strides = array<i32>} : memref<440x256xf32, #tpu.memory_space<vmem>>, vector<8x256xf32>,
    %c1_i32_57 = arith.constant 1 : i32
    %102 = tpu.dynamic_rotate %89 by %c1_i32_57 dim 1 : vector<8x256xf32>, i32 -> vector<8x256xf32>
    %103 = vector.broadcast %9 : vector<1x256xf32> to vector<8x256xf32>
    %104 = arith.mulf %102, %103 : vector<8x256xf32>
    %c176 = arith.constant 176 : index
    %c0_58 = arith.constant 0 : index
    %105 = vector.load %arg5[%c176, %c0_58] : memref<440x256xf32, #tpu.memory_space<vmem>>, vector<8x256xf32>
    tpu.vector_store %arg5[%c176, %c0_58], %104 {strides = array<i32>} : memref<440x256xf32, #tpu.memory_space<vmem>>, vector<8x256xf32>,
    %c184 = arith.constant 184 : index
    %c0_59 = arith.constant 0 : index
    %106 = vector.load %arg5[%c184, %c0_59] : memref<440x256xf32, #tpu.memory_space<vmem>>, vector<8x256xf32>
    tpu.vector_store %arg5[%c184, %c0_59], %89 {strides = array<i32>} : memref<440x256xf32, #tpu.memory_space<vmem>>, vector<8x256xf32>,
    %c255_i32_60 = arith.constant 255 : i32
    %107 = tpu.dynamic_rotate %89 by %c255_i32_60 dim 1 : vector<8x256xf32>, i32 -> vector<8x256xf32>
    %108 = vector.broadcast %10 : vector<1x256xf32> to vector<8x256xf32>
    %109 = arith.mulf %107, %108 : vector<8x256xf32>
    %c192 = arith.constant 192 : index
    %c0_61 = arith.constant 0 : index
    %110 = vector.load %arg5[%c192, %c0_61] : memref<440x256xf32, #tpu.memory_space<vmem>>, vector<8x256xf32>
    tpu.vector_store %arg5[%c192, %c0_61], %109 {strides = array<i32>} : memref<440x256xf32, #tpu.memory_space<vmem>>, vector<8x256xf32>,
    %c241_i32_62 = arith.constant 241 : i32
    %111 = tpu.dynamic_rotate %89 by %c241_i32_62 dim 1 : vector<8x256xf32>, i32 -> vector<8x256xf32>
    %112 = vector.broadcast %11 : vector<1x256xf32> to vector<8x256xf32>
    %113 = arith.mulf %111, %112 : vector<8x256xf32>
    %c200 = arith.constant 200 : index
    %c0_63 = arith.constant 0 : index
    %114 = vector.load %arg5[%c200, %c0_63] : memref<440x256xf32, #tpu.memory_space<vmem>>, vector<8x256xf32>
    tpu.vector_store %arg5[%c200, %c0_63], %113 {strides = array<i32>} : memref<440x256xf32, #tpu.memory_space<vmem>>, vector<8x256xf32>,
    %c240_i32_64 = arith.constant 240 : i32
    %115 = tpu.dynamic_rotate %89 by %c240_i32_64 dim 1 : vector<8x256xf32>, i32 -> vector<8x256xf32>
    %116 = vector.broadcast %12 : vector<1x256xf32> to vector<8x256xf32>
    %117 = arith.mulf %115, %116 : vector<8x256xf32>
    %c208 = arith.constant 208 : index
    %c0_65 = arith.constant 0 : index
    %118 = vector.load %arg5[%c208, %c0_65] : memref<440x256xf32, #tpu.memory_space<vmem>>, vector<8x256xf32>
    tpu.vector_store %arg5[%c208, %c0_65], %117 {strides = array<i32>} : memref<440x256xf32, #tpu.memory_space<vmem>>, vector<8x256xf32>,
    %c239_i32_66 = arith.constant 239 : i32
    %119 = tpu.dynamic_rotate %89 by %c239_i32_66 dim 1 : vector<8x256xf32>, i32 -> vector<8x256xf32>
    %120 = vector.broadcast %13 : vector<1x256xf32> to vector<8x256xf32>
    %121 = arith.mulf %119, %120 : vector<8x256xf32>
    %c216 = arith.constant 216 : index
    %c0_67 = arith.constant 0 : index
    %122 = vector.load %arg5[%c216, %c0_67] : memref<440x256xf32, #tpu.memory_space<vmem>>, vector<8x256xf32>
    tpu.vector_store %arg5[%c216, %c0_67], %121 {strides = array<i32>} : memref<440x256xf32, #tpu.memory_space<vmem>>, vector<8x256xf32>,
    %c2_68 = arith.constant 2 : index
    %c0_69 = arith.constant 0 : index
    %c0_70 = arith.constant 0 : index
    %123 = vector.load %arg2[%c2_68, %c0_69, %c0_70] : memref<6x8x440xf32, #tpu.memory_space<vmem>>, vector<1x8x224xf32>
    %124 = vector.shape_cast %123 : vector<1x8x224xf32> to vector<8x224xf32>
    %c0_71 = arith.constant 0 : index
    %c0_72 = arith.constant 0 : index
    %125 = vector.load %arg5[%c0_71, %c0_72] : memref<440x256xf32, #tpu.memory_space<vmem>>, vector<224x256xf32>
    %cst_73 = arith.constant dense<0.000000e+00> : vector<8x256xf32>
    %126 = tpu.matmul %124, %125, %cst_73 {dimension_numbers = #tpu.dot_dimension_numbers<[1], [0], [0], [1], [0, 0, 1, 1], [], []>} : vector<8x224xf32>, vector<224x256xf32>, vector<8x256xf32> -> vector<8x256xf32>
    %c17_i32_74 = arith.constant 17 : i32
    %127 = tpu.dynamic_rotate %126 by %c17_i32_74 dim 1 : vector<8x256xf32>, i32 -> vector<8x256xf32>
    %128 = vector.broadcast %6 : vector<1x256xf32> to vector<8x256xf32>
    %129 = arith.mulf %127, %128 : vector<8x256xf32>
    %c224 = arith.constant 224 : index
    %c0_75 = arith.constant 0 : index
    %130 = vector.load %arg5[%c224, %c0_75] : memref<440x256xf32, #tpu.memory_space<vmem>>, vector<8x256xf32>
    tpu.vector_store %arg5[%c224, %c0_75], %129 {strides = array<i32>} : memref<440x256xf32, #tpu.memory_space<vmem>>, vector<8x256xf32>,
    %c16_i32_76 = arith.constant 16 : i32
    %131 = tpu.dynamic_rotate %126 by %c16_i32_76 dim 1 : vector<8x256xf32>, i32 -> vector<8x256xf32>
    %132 = vector.broadcast %7 : vector<1x256xf32> to vector<8x256xf32>
    %133 = arith.mulf %131, %132 : vector<8x256xf32>
    %c232 = arith.constant 232 : index
    %c0_77 = arith.constant 0 : index
    %134 = vector.load %arg5[%c232, %c0_77] : memref<440x256xf32, #tpu.memory_space<vmem>>, vector<8x256xf32>
    tpu.vector_store %arg5[%c232, %c0_77], %133 {strides = array<i32>} : memref<440x256xf32, #tpu.memory_space<vmem>>, vector<8x256xf32>,
    %c15_i32_78 = arith.constant 15 : i32
    %135 = tpu.dynamic_rotate %126 by %c15_i32_78 dim 1 : vector<8x256xf32>, i32 -> vector<8x256xf32>
    %136 = vector.broadcast %8 : vector<1x256xf32> to vector<8x256xf32>
    %137 = arith.mulf %135, %136 : vector<8x256xf32>
    %c240 = arith.constant 240 : index
    %c0_79 = arith.constant 0 : index
    %138 = vector.load %arg5[%c240, %c0_79] : memref<440x256xf32, #tpu.memory_space<vmem>>, vector<8x256xf32>
    tpu.vector_store %arg5[%c240, %c0_79], %137 {strides = array<i32>} : memref<440x256xf32, #tpu.memory_space<vmem>>, vector<8x256xf32>,
    %c1_i32_80 = arith.constant 1 : i32
    %139 = tpu.dynamic_rotate %126 by %c1_i32_80 dim 1 : vector<8x256xf32>, i32 -> vector<8x256xf32>
    %140 = vector.broadcast %9 : vector<1x256xf32> to vector<8x256xf32>
    %141 = arith.mulf %139, %140 : vector<8x256xf32>
    %c248 = arith.constant 248 : index
    %c0_81 = arith.constant 0 : index
    %142 = vector.load %arg5[%c248, %c0_81] : memref<440x256xf32, #tpu.memory_space<vmem>>, vector<8x256xf32>
    tpu.vector_store %arg5[%c248, %c0_81], %141 {strides = array<i32>} : memref<440x256xf32, #tpu.memory_space<vmem>>, vector<8x256xf32>,
    %c256 = arith.constant 256 : index
    %c0_82 = arith.constant 0 : index
    %143 = vector.load %arg5[%c256, %c0_82] : memref<440x256xf32, #tpu.memory_space<vmem>>, vector<8x256xf32>
    tpu.vector_store %arg5[%c256, %c0_82], %126 {strides = array<i32>} : memref<440x256xf32, #tpu.memory_space<vmem>>, vector<8x256xf32>,
    %c255_i32_83 = arith.constant 255 : i32
    %144 = tpu.dynamic_rotate %126 by %c255_i32_83 dim 1 : vector<8x256xf32>, i32 -> vector<8x256xf32>
    %145 = vector.broadcast %10 : vector<1x256xf32> to vector<8x256xf32>
    %146 = arith.mulf %144, %145 : vector<8x256xf32>
    %c264 = arith.constant 264 : index
    %c0_84 = arith.constant 0 : index
    %147 = vector.load %arg5[%c264, %c0_84] : memref<440x256xf32, #tpu.memory_space<vmem>>, vector<8x256xf32>
    tpu.vector_store %arg5[%c264, %c0_84], %146 {strides = array<i32>} : memref<440x256xf32, #tpu.memory_space<vmem>>, vector<8x256xf32>,
    %c241_i32_85 = arith.constant 241 : i32
    %148 = tpu.dynamic_rotate %126 by %c241_i32_85 dim 1 : vector<8x256xf32>, i32 -> vector<8x256xf32>
    %149 = vector.broadcast %11 : vector<1x256xf32> to vector<8x256xf32>
    %150 = arith.mulf %148, %149 : vector<8x256xf32>
    %c272 = arith.constant 272 : index
    %c0_86 = arith.constant 0 : index
    %151 = vector.load %arg5[%c272, %c0_86] : memref<440x256xf32, #tpu.memory_space<vmem>>, vector<8x256xf32>
    tpu.vector_store %arg5[%c272, %c0_86], %150 {strides = array<i32>} : memref<440x256xf32, #tpu.memory_space<vmem>>, vector<8x256xf32>,
    %c240_i32_87 = arith.constant 240 : i32
    %152 = tpu.dynamic_rotate %126 by %c240_i32_87 dim 1 : vector<8x256xf32>, i32 -> vector<8x256xf32>
    %153 = vector.broadcast %12 : vector<1x256xf32> to vector<8x256xf32>
    %154 = arith.mulf %152, %153 : vector<8x256xf32>
    %c280 = arith.constant 280 : index
    %c0_88 = arith.constant 0 : index
    %155 = vector.load %arg5[%c280, %c0_88] : memref<440x256xf32, #tpu.memory_space<vmem>>, vector<8x256xf32>
    tpu.vector_store %arg5[%c280, %c0_88], %154 {strides = array<i32>} : memref<440x256xf32, #tpu.memory_space<vmem>>, vector<8x256xf32>,
    %c239_i32_89 = arith.constant 239 : i32
    %156 = tpu.dynamic_rotate %126 by %c239_i32_89 dim 1 : vector<8x256xf32>, i32 -> vector<8x256xf32>
    %157 = vector.broadcast %13 : vector<1x256xf32> to vector<8x256xf32>
    %158 = arith.mulf %156, %157 : vector<8x256xf32>
    %c288 = arith.constant 288 : index
    %c0_90 = arith.constant 0 : index
    %159 = vector.load %arg5[%c288, %c0_90] : memref<440x256xf32, #tpu.memory_space<vmem>>, vector<8x256xf32>
    tpu.vector_store %arg5[%c288, %c0_90], %158 {strides = array<i32>} : memref<440x256xf32, #tpu.memory_space<vmem>>, vector<8x256xf32>,
    %c3_91 = arith.constant 3 : index
    %c0_92 = arith.constant 0 : index
    %c0_93 = arith.constant 0 : index
    %160 = vector.load %arg2[%c3_91, %c0_92, %c0_93] : memref<6x8x440xf32, #tpu.memory_space<vmem>>, vector<1x8x296xf32>
    %161 = vector.shape_cast %160 : vector<1x8x296xf32> to vector<8x296xf32>
    %c0_94 = arith.constant 0 : index
    %c0_95 = arith.constant 0 : index
    %162 = vector.load %arg5[%c0_94, %c0_95] : memref<440x256xf32, #tpu.memory_space<vmem>>, vector<296x256xf32>
    %cst_96 = arith.constant dense<0.000000e+00> : vector<8x256xf32>
    %163 = tpu.matmul %161, %162, %cst_96 {dimension_numbers = #tpu.dot_dimension_numbers<[1], [0], [0], [1], [0, 0, 1, 1], [], []>} : vector<8x296xf32>, vector<296x256xf32>, vector<8x256xf32> -> vector<8x256xf32>
    %c17_i32_97 = arith.constant 17 : i32
    %164 = tpu.dynamic_rotate %163 by %c17_i32_97 dim 1 : vector<8x256xf32>, i32 -> vector<8x256xf32>
    %165 = vector.broadcast %6 : vector<1x256xf32> to vector<8x256xf32>
    %166 = arith.mulf %164, %165 : vector<8x256xf32>
    %c296 = arith.constant 296 : index
    %c0_98 = arith.constant 0 : index
    %167 = vector.load %arg5[%c296, %c0_98] : memref<440x256xf32, #tpu.memory_space<vmem>>, vector<8x256xf32>
    tpu.vector_store %arg5[%c296, %c0_98], %166 {strides = array<i32>} : memref<440x256xf32, #tpu.memory_space<vmem>>, vector<8x256xf32>,
    %c16_i32_99 = arith.constant 16 : i32
    %168 = tpu.dynamic_rotate %163 by %c16_i32_99 dim 1 : vector<8x256xf32>, i32 -> vector<8x256xf32>
    %169 = vector.broadcast %7 : vector<1x256xf32> to vector<8x256xf32>
    %170 = arith.mulf %168, %169 : vector<8x256xf32>
    %c304 = arith.constant 304 : index
    %c0_100 = arith.constant 0 : index
    %171 = vector.load %arg5[%c304, %c0_100] : memref<440x256xf32, #tpu.memory_space<vmem>>, vector<8x256xf32>
    tpu.vector_store %arg5[%c304, %c0_100], %170 {strides = array<i32>} : memref<440x256xf32, #tpu.memory_space<vmem>>, vector<8x256xf32>,
    %c15_i32_101 = arith.constant 15 : i32
    %172 = tpu.dynamic_rotate %163 by %c15_i32_101 dim 1 : vector<8x256xf32>, i32 -> vector<8x256xf32>
    %173 = vector.broadcast %8 : vector<1x256xf32> to vector<8x256xf32>
    %174 = arith.mulf %172, %173 : vector<8x256xf32>
    %c312 = arith.constant 312 : index
    %c0_102 = arith.constant 0 : index
    %175 = vector.load %arg5[%c312, %c0_102] : memref<440x256xf32, #tpu.memory_space<vmem>>, vector<8x256xf32>
    tpu.vector_store %arg5[%c312, %c0_102], %174 {strides = array<i32>} : memref<440x256xf32, #tpu.memory_space<vmem>>, vector<8x256xf32>,
    %c1_i32_103 = arith.constant 1 : i32
    %176 = tpu.dynamic_rotate %163 by %c1_i32_103 dim 1 : vector<8x256xf32>, i32 -> vector<8x256xf32>
    %177 = vector.broadcast %9 : vector<1x256xf32> to vector<8x256xf32>
    %178 = arith.mulf %176, %177 : vector<8x256xf32>
    %c320 = arith.constant 320 : index
    %c0_104 = arith.constant 0 : index
    %179 = vector.load %arg5[%c320, %c0_104] : memref<440x256xf32, #tpu.memory_space<vmem>>, vector<8x256xf32>
    tpu.vector_store %arg5[%c320, %c0_104], %178 {strides = array<i32>} : memref<440x256xf32, #tpu.memory_space<vmem>>, vector<8x256xf32>,
    %c328 = arith.constant 328 : index
    %c0_105 = arith.constant 0 : index
    %180 = vector.load %arg5[%c328, %c0_105] : memref<440x256xf32, #tpu.memory_space<vmem>>, vector<8x256xf32>
    tpu.vector_store %arg5[%c328, %c0_105], %163 {strides = array<i32>} : memref<440x256xf32, #tpu.memory_space<vmem>>, vector<8x256xf32>,
    %c255_i32_106 = arith.constant 255 : i32
    %181 = tpu.dynamic_rotate %163 by %c255_i32_106 dim 1 : vector<8x256xf32>, i32 -> vector<8x256xf32>
    %182 = vector.broadcast %10 : vector<1x256xf32> to vector<8x256xf32>
    %183 = arith.mulf %181, %182 : vector<8x256xf32>
    %c336 = arith.constant 336 : index
    %c0_107 = arith.constant 0 : index
    %184 = vector.load %arg5[%c336, %c0_107] : memref<440x256xf32, #tpu.memory_space<vmem>>, vector<8x256xf32>
    tpu.vector_store %arg5[%c336, %c0_107], %183 {strides = array<i32>} : memref<440x256xf32, #tpu.memory_space<vmem>>, vector<8x256xf32>,
    %c241_i32_108 = arith.constant 241 : i32
    %185 = tpu.dynamic_rotate %163 by %c241_i32_108 dim 1 : vector<8x256xf32>, i32 -> vector<8x256xf32>
    %186 = vector.broadcast %11 : vector<1x256xf32> to vector<8x256xf32>
    %187 = arith.mulf %185, %186 : vector<8x256xf32>
    %c344 = arith.constant 344 : index
    %c0_109 = arith.constant 0 : index
    %188 = vector.load %arg5[%c344, %c0_109] : memref<440x256xf32, #tpu.memory_space<vmem>>, vector<8x256xf32>
    tpu.vector_store %arg5[%c344, %c0_109], %187 {strides = array<i32>} : memref<440x256xf32, #tpu.memory_space<vmem>>, vector<8x256xf32>,
    %c240_i32_110 = arith.constant 240 : i32
    %189 = tpu.dynamic_rotate %163 by %c240_i32_110 dim 1 : vector<8x256xf32>, i32 -> vector<8x256xf32>
    %190 = vector.broadcast %12 : vector<1x256xf32> to vector<8x256xf32>
    %191 = arith.mulf %189, %190 : vector<8x256xf32>
    %c352 = arith.constant 352 : index
    %c0_111 = arith.constant 0 : index
    %192 = vector.load %arg5[%c352, %c0_111] : memref<440x256xf32, #tpu.memory_space<vmem>>, vector<8x256xf32>
    tpu.vector_store %arg5[%c352, %c0_111], %191 {strides = array<i32>} : memref<440x256xf32, #tpu.memory_space<vmem>>, vector<8x256xf32>,
    %c239_i32_112 = arith.constant 239 : i32
    %193 = tpu.dynamic_rotate %163 by %c239_i32_112 dim 1 : vector<8x256xf32>, i32 -> vector<8x256xf32>
    %194 = vector.broadcast %13 : vector<1x256xf32> to vector<8x256xf32>
    %195 = arith.mulf %193, %194 : vector<8x256xf32>
    %c360 = arith.constant 360 : index
    %c0_113 = arith.constant 0 : index
    %196 = vector.load %arg5[%c360, %c0_113] : memref<440x256xf32, #tpu.memory_space<vmem>>, vector<8x256xf32>
    tpu.vector_store %arg5[%c360, %c0_113], %195 {strides = array<i32>} : memref<440x256xf32, #tpu.memory_space<vmem>>, vector<8x256xf32>,
    %c4 = arith.constant 4 : index
    %c0_114 = arith.constant 0 : index
    %c0_115 = arith.constant 0 : index
    %197 = vector.load %arg2[%c4, %c0_114, %c0_115] : memref<6x8x440xf32, #tpu.memory_space<vmem>>, vector<1x8x368xf32>
    %198 = vector.shape_cast %197 : vector<1x8x368xf32> to vector<8x368xf32>
    %c0_116 = arith.constant 0 : index
    %c0_117 = arith.constant 0 : index
    %199 = vector.load %arg5[%c0_116, %c0_117] : memref<440x256xf32, #tpu.memory_space<vmem>>, vector<368x256xf32>
    %cst_118 = arith.constant dense<0.000000e+00> : vector<8x256xf32>
    %200 = tpu.matmul %198, %199, %cst_118 {dimension_numbers = #tpu.dot_dimension_numbers<[1], [0], [0], [1], [0, 0, 1, 1], [], []>} : vector<8x368xf32>, vector<368x256xf32>, vector<8x256xf32> -> vector<8x256xf32>
    %c17_i32_119 = arith.constant 17 : i32
    %201 = tpu.dynamic_rotate %200 by %c17_i32_119 dim 1 : vector<8x256xf32>, i32 -> vector<8x256xf32>
    %202 = vector.broadcast %6 : vector<1x256xf32> to vector<8x256xf32>
    %203 = arith.mulf %201, %202 : vector<8x256xf32>
    %c368 = arith.constant 368 : index
    %c0_120 = arith.constant 0 : index
    %204 = vector.load %arg5[%c368, %c0_120] : memref<440x256xf32, #tpu.memory_space<vmem>>, vector<8x256xf32>
    tpu.vector_store %arg5[%c368, %c0_120], %203 {strides = array<i32>} : memref<440x256xf32, #tpu.memory_space<vmem>>, vector<8x256xf32>,
    %c16_i32_121 = arith.constant 16 : i32
    %205 = tpu.dynamic_rotate %200 by %c16_i32_121 dim 1 : vector<8x256xf32>, i32 -> vector<8x256xf32>
    %206 = vector.broadcast %7 : vector<1x256xf32> to vector<8x256xf32>
    %207 = arith.mulf %205, %206 : vector<8x256xf32>
    %c376 = arith.constant 376 : index
    %c0_122 = arith.constant 0 : index
    %208 = vector.load %arg5[%c376, %c0_122] : memref<440x256xf32, #tpu.memory_space<vmem>>, vector<8x256xf32>
    tpu.vector_store %arg5[%c376, %c0_122], %207 {strides = array<i32>} : memref<440x256xf32, #tpu.memory_space<vmem>>, vector<8x256xf32>,
    %c15_i32_123 = arith.constant 15 : i32
    %209 = tpu.dynamic_rotate %200 by %c15_i32_123 dim 1 : vector<8x256xf32>, i32 -> vector<8x256xf32>
    %210 = vector.broadcast %8 : vector<1x256xf32> to vector<8x256xf32>
    %211 = arith.mulf %209, %210 : vector<8x256xf32>
    %c384 = arith.constant 384 : index
    %c0_124 = arith.constant 0 : index
    %212 = vector.load %arg5[%c384, %c0_124] : memref<440x256xf32, #tpu.memory_space<vmem>>, vector<8x256xf32>
    tpu.vector_store %arg5[%c384, %c0_124], %211 {strides = array<i32>} : memref<440x256xf32, #tpu.memory_space<vmem>>, vector<8x256xf32>,
    %c1_i32_125 = arith.constant 1 : i32
    %213 = tpu.dynamic_rotate %200 by %c1_i32_125 dim 1 : vector<8x256xf32>, i32 -> vector<8x256xf32>
    %214 = vector.broadcast %9 : vector<1x256xf32> to vector<8x256xf32>
    %215 = arith.mulf %213, %214 : vector<8x256xf32>
    %c392 = arith.constant 392 : index
    %c0_126 = arith.constant 0 : index
    %216 = vector.load %arg5[%c392, %c0_126] : memref<440x256xf32, #tpu.memory_space<vmem>>, vector<8x256xf32>
    tpu.vector_store %arg5[%c392, %c0_126], %215 {strides = array<i32>} : memref<440x256xf32, #tpu.memory_space<vmem>>, vector<8x256xf32>,
    %c400 = arith.constant 400 : index
    %c0_127 = arith.constant 0 : index
    %217 = vector.load %arg5[%c400, %c0_127] : memref<440x256xf32, #tpu.memory_space<vmem>>, vector<8x256xf32>
    tpu.vector_store %arg5[%c400, %c0_127], %200 {strides = array<i32>} : memref<440x256xf32, #tpu.memory_space<vmem>>, vector<8x256xf32>,
    %c255_i32_128 = arith.constant 255 : i32
    %218 = tpu.dynamic_rotate %200 by %c255_i32_128 dim 1 : vector<8x256xf32>, i32 -> vector<8x256xf32>
    %219 = vector.broadcast %10 : vector<1x256xf32> to vector<8x256xf32>
    %220 = arith.mulf %218, %219 : vector<8x256xf32>
    %c408 = arith.constant 408 : index
    %c0_129 = arith.constant 0 : index
    %221 = vector.load %arg5[%c408, %c0_129] : memref<440x256xf32, #tpu.memory_space<vmem>>, vector<8x256xf32>
    tpu.vector_store %arg5[%c408, %c0_129], %220 {strides = array<i32>} : memref<440x256xf32, #tpu.memory_space<vmem>>, vector<8x256xf32>,
    %c241_i32_130 = arith.constant 241 : i32
    %222 = tpu.dynamic_rotate %200 by %c241_i32_130 dim 1 : vector<8x256xf32>, i32 -> vector<8x256xf32>
    %223 = vector.broadcast %11 : vector<1x256xf32> to vector<8x256xf32>
    %224 = arith.mulf %222, %223 : vector<8x256xf32>
    %c416 = arith.constant 416 : index
    %c0_131 = arith.constant 0 : index
    %225 = vector.load %arg5[%c416, %c0_131] : memref<440x256xf32, #tpu.memory_space<vmem>>, vector<8x256xf32>
    tpu.vector_store %arg5[%c416, %c0_131], %224 {strides = array<i32>} : memref<440x256xf32, #tpu.memory_space<vmem>>, vector<8x256xf32>,
    %c240_i32_132 = arith.constant 240 : i32
    %226 = tpu.dynamic_rotate %200 by %c240_i32_132 dim 1 : vector<8x256xf32>, i32 -> vector<8x256xf32>
    %227 = vector.broadcast %12 : vector<1x256xf32> to vector<8x256xf32>
    %228 = arith.mulf %226, %227 : vector<8x256xf32>
    %c424 = arith.constant 424 : index
    %c0_133 = arith.constant 0 : index
    %229 = vector.load %arg5[%c424, %c0_133] : memref<440x256xf32, #tpu.memory_space<vmem>>, vector<8x256xf32>
    tpu.vector_store %arg5[%c424, %c0_133], %228 {strides = array<i32>} : memref<440x256xf32, #tpu.memory_space<vmem>>, vector<8x256xf32>,
    %c239_i32_134 = arith.constant 239 : i32
    %230 = tpu.dynamic_rotate %200 by %c239_i32_134 dim 1 : vector<8x256xf32>, i32 -> vector<8x256xf32>
    %231 = vector.broadcast %13 : vector<1x256xf32> to vector<8x256xf32>
    %232 = arith.mulf %230, %231 : vector<8x256xf32>
    %c432 = arith.constant 432 : index
    %c0_135 = arith.constant 0 : index
    %233 = vector.load %arg5[%c432, %c0_135] : memref<440x256xf32, #tpu.memory_space<vmem>>, vector<8x256xf32>
    tpu.vector_store %arg5[%c432, %c0_135], %232 {strides = array<i32>} : memref<440x256xf32, #tpu.memory_space<vmem>>, vector<8x256xf32>,
    %c5_136 = arith.constant 5 : index
    %c0_137 = arith.constant 0 : index
    %c0_138 = arith.constant 0 : index
    %234 = vector.load %arg2[%c5_136, %c0_137, %c0_138] : memref<6x8x440xf32, #tpu.memory_space<vmem>>, vector<1x8x440xf32>
    %235 = vector.shape_cast %234 : vector<1x8x440xf32> to vector<8x440xf32>
    %c0_139 = arith.constant 0 : index
    %c0_140 = arith.constant 0 : index
    %236 = vector.load %arg5[%c0_139, %c0_140] : memref<440x256xf32, #tpu.memory_space<vmem>>, vector<440x256xf32>
    %cst_141 = arith.constant dense<0.000000e+00> : vector<8x256xf32>
    %237 = tpu.matmul %235, %236, %cst_141 {dimension_numbers = #tpu.dot_dimension_numbers<[1], [0], [0], [1], [0, 0, 1, 1], [], []>} : vector<8x440xf32>, vector<440x256xf32>, vector<8x256xf32> -> vector<8x256xf32>
    %c0_142 = arith.constant 0 : index
    %c0_143 = arith.constant 0 : index
    %c0_144 = arith.constant 0 : index
    %238 = vector.load %arg4[%c0_142, %c0_143, %c0_144] : memref<1x8x256xf32, #tpu.memory_space<vmem>>, vector<1x8x256xf32>
    %239 = vector.shape_cast %238 : vector<1x8x256xf32> to vector<8x256xf32>
    %240 = vector.shape_cast %237 : vector<8x256xf32> to vector<1x8x256xf32>
    tpu.vector_store %arg4[%c0_142, %c0_143, %c0_144], %240 {strides = array<i32>} : memref<1x8x256xf32, #tpu.memory_space<vmem>>, vector<1x8x256xf32>,
    return
  }
  func.func @transform_0(%arg0: i32) -> (i32, i32, i32) {
    %c0_i32 = arith.constant 0 : i32
    %c0_i32_0 = arith.constant 0 : i32
    %c0_i32_1 = arith.constant 0 : i32
    return %arg0, %c0_i32, %c0_i32_0 : i32, i32, i32
  }
  func.func @transform_1(%arg0: i32) -> (i32, i32, i32) {
    %c0_i32 = arith.constant 0 : i32
    %c0_i32_0 = arith.constant 0 : i32
    %c0_i32_1 = arith.constant 0 : i32
    %c0_i32_2 = arith.constant 0 : i32
    return %c0_i32, %c0_i32_0, %c0_i32_1 : i32, i32, i32
  }
  func.func @transform_2(%arg0: i32) -> (i32, i32) {
    %c0_i32 = arith.constant 0 : i32
    %c0_i32_0 = arith.constant 0 : i32
    %c0_i32_1 = arith.constant 0 : i32
    return %c0_i32, %c0_i32_0 : i32, i32
  }
  func.func @transform_3(%arg0: i32) -> (i32, i32, i32) {
    %c0_i32 = arith.constant 0 : i32
    %c0_i32_0 = arith.constant 0 : i32
    %c0_i32_1 = arith.constant 0 : i32
    return %arg0, %c0_i32, %c0_i32_0 : i32, i32, i32
  }
}

</mosaic_0001>

<llo_original>
// kernel: one_block_forward.1
$region0: #{one_block_forward.1}
  #allocation0 [shape = 'u32[]', space=smem, size = 0x4, offset = 0x4, fixed_abs, tag = 'smem constant byte address 0x4 - core index']
  #allocation1 [shape = 'u32[144,128]{1,0:T(1,128)}', space=vmem, size = 0x12000, scoped, tag = 'internal scratch']
  #allocation2 [shape = 'f32[440,256]{1,0:T(8,128)}', space=vmem, size = 0x6e000, scoped, tag = 'scratch operand']
  %s0 = inlined_call_operand.vmem [shape: f32[2,8,256], index: 0, kind: input, shape index: {}]
  %s1 = inlined_call_operand.vmem [shape: f32[6,8,440], index: 1, kind: input, shape index: {}]
  %s2 = inlined_call_operand.vmem [shape: f32[9,256], index: 2, kind: input, shape index: {}]
  %s3 = inlined_call_operand.vmem [shape: f32[2,8,256], index: 3, kind: output, shape index: {}]
  %s4 = sld [smem:[#allocation0]]
  $region45: #{one_block_forward.1} parent=0
    _
  %s6 = ssub.s32 1, %s4
  %s7 = scalar_select 0, %s6, %s4
  loop: start=0, step=1, limit=4
  $region2: #{one_block_forward.1} parent=0 // loop_pre_header
    _
  $region3: #{one_block_forward.1} parent=0 // loop_header
    %s9 = sphi 0, %s13
    %p10 = scmp.ge.s32.totalorder %s9, 4
    %s19 = sphi 0, %s21
    %s22 = sphi 0, %s19
    %s23 = sphi 0, %s22
    %s39 = sphi 0, %s23
    %s43 = sphi 0, %s43
    %s45 = sphi 0, %s43
    %s46 = sphi 0, %s45
    %s60 = sphi 0, %s46
    %s64 = sphi 0, %s64
    %s66 = sphi 0, %s64
    %s67 = sphi 0, %s66
    %s81 = sphi 0, %s67
    %s87 = sphi 0, %s89
    %s90 = sphi 0, %s87
    %s91 = sphi 0, %s90
    %s107 = sphi 0, %s91
  $region4: #{one_block_forward.1} parent=0 // loop_header_branch
    %12 = sbr.rel (%p10) target = $region8
  $region5: #{one_block_forward.1} parent=0 // loop_body
    %s14 = ssub.s32 %s9, 1
    %s15 = ssub.s32 %s9, 2
    %s16 = sadd.s32 %s9, 1
    %s17 = ssub.s32 %s9, %s16
    %p18 = scmp.eq.s32.totalorder %s17, 0
    %s20 = sadd.s32 %s19, 1
    %s21 = scalar_select %p18, %s19, %s20
    %p24 = pneg %p18
    %p25 = scmp.eq.s32.totalorder %s9, 1
    %p26 = por %p24, %p25
    %p27 = scmp.ne.s32.totalorder %s19, %s22
    %p28 = scmp.eq.s32.totalorder %s9, 0
    %p29 = por %p27, %p28
    %p30 = scmp.ne.s32.totalorder %s19, %s22
    %p31 = scmp.eq.s32.totalorder %s14, 1
    %p32 = por %p30, %p31
    %p33 = scmp.ne.s32.totalorder %s22, %s23
    %p34 = scmp.eq.s32.totalorder %s14, 0
    %p35 = por %p33, %p34
    %p36 = scmp.ne.s32.totalorder %s22, %s23
    %p37 = scmp.eq.s32.totalorder %s15, 1
    %p38 = por %p36, %p37
    %p40 = scmp.ne.s32.totalorder %s23, %s39
    %p41 = scmp.eq.s32.totalorder %s15, 0
    %p42 = por %p40, %p41
    %s44 = sadd.s32 %s43, 1
    %p47 = scmp.eq.s32.totalorder %s9, 1
    %p48 = scmp.ne.s32.totalorder %s43, %s45
    %p49 = scmp.eq.s32.totalorder %s9, 0
    %p50 = por %p48, %p49
    %p51 = scmp.ne.s32.totalorder %s43, %s45
    %p52 = scmp.eq.s32.totalorder %s14, 1
    %p53 = por %p51, %p52
    %p54 = scmp.ne.s32.totalorder %s45, %s46
    %p55 = scmp.eq.s32.totalorder %s14, 0
    %p56 = por %p54, %p55
    %p57 = scmp.ne.s32.totalorder %s45, %s46
    %p58 = scmp.eq.s32.totalorder %s15, 1
    %p59 = por %p57, %p58
    %p61 = scmp.ne.s32.totalorder %s46, %s60
    %p62 = scmp.eq.s32.totalorder %s15, 0
    %p63 = por %p61, %p62
    %s65 = sadd.s32 %s64, 1
    %p68 = scmp.eq.s32.totalorder %s9, 1
    %p69 = scmp.ne.s32.totalorder %s64, %s66
    %p70 = scmp.eq.s32.totalorder %s9, 0
    %p71 = por %p69, %p70
    %p72 = scmp.ne.s32.totalorder %s64, %s66
    %p73 = scmp.eq.s32.totalorder %s14, 1
    %p74 = por %p72, %p73
    %p75 = scmp.ne.s32.totalorder %s66, %s67
    %p76 = scmp.eq.s32.totalorder %s14, 0
    %p77 = por %p75, %p76
    %p78 = scmp.ne.s32.totalorder %s66, %s67
    %p79 = scmp.eq.s32.totalorder %s15, 1
    %p80 = por %p78, %p79
    %p82 = scmp.ne.s32.totalorder %s67, %s81
    %p83 = scmp.eq.s32.totalorder %s15, 0
    %p84 = por %p82, %p83
    %s85 = ssub.s32 %s9, %s16
    %p86 = scmp.eq.s32.totalorder %s85, 0
    %s88 = sadd.s32 %s87, 1
    %s89 = scalar_select %p86, %s87, %s88
    %p92 = pneg %p86
    %p93 = scmp.eq.s32.totalorder %s9, 1
    %p94 = por %p92, %p93
    %p95 = scmp.ne.s32.totalorder %s87, %s90
    %p96 = scmp.eq.s32.totalorder %s9, 0
    %p97 = por %p95, %p96
    %p98 = scmp.ne.s32.totalorder %s87, %s90
    %p99 = scmp.eq.s32.totalorder %s14, 1
    %p100 = por %p98, %p99
    %p101 = scmp.ne.s32.totalorder %s90, %s91
    %p102 = scmp.eq.s32.totalorder %s14, 0
    %p103 = por %p101, %p102
    %p104 = scmp.ne.s32.totalorder %s90, %s91
    %p105 = scmp.eq.s32.totalorder %s15, 1
    %p106 = por %p104, %p105
    %p108 = scmp.ne.s32.totalorder %s91, %s107
    %p109 = scmp.eq.s32.totalorder %s15, 0
    %p110 = por %p108, %p109
    %p111 = scmp.le.s32.totalorder 1, %s9
    %p112 = scmp.lt.s32.totalorder %s9, 3
    %p113 = pnand %p111, %p112
    %p114 = pneg %p113
    // Predicated region
    $region9: #{one_block_forward.1} parent=5 // pred_check
      _
    $region10: #{one_block_forward.1} parent=5 // pred_check_branch
      %116 = sbr.rel (%p113) target = $region12
    $region11: #{one_block_forward.1} parent=5 // pred_region
      %s117 = ssub.s32 %s9, 1
      // Predicated region
      $region13: #{one_block_forward.1} parent=11 // pred_check
        %p118 = pneg %p56
      $region14: #{one_block_forward.1} parent=11 // pred_check_branch
        %120 = sbr.rel (%p118) target = $region16
      $region15: #{one_block_forward.1} parent=11 // pred_region
        _
      $region16: #{one_block_forward.1} parent=11 // pred_fallthru
        _
      // Predicated region
      $region17: #{one_block_forward.1} parent=11 // pred_check
        %p121 = pneg %p77
      $region18: #{one_block_forward.1} parent=11 // pred_check_branch
        %123 = sbr.rel (%p121) target = $region20
      $region19: #{one_block_forward.1} parent=11 // pred_region
        _
      $region20: #{one_block_forward.1} parent=11 // pred_fallthru
        _
    $region12: #{one_block_forward.1} parent=5 // pred_fallthru
      _
    %p124 = scmp.lt.s32.totalorder %s9, 2
    // Predicated region
    $region21: #{one_block_forward.1} parent=5 // pred_check
      %p125 = pneg %p124
    $region22: #{one_block_forward.1} parent=5 // pred_check_branch
      %127 = sbr.rel (%p125) target = $region24
    $region23: #{one_block_forward.1} parent=5 // pred_region
      // Predicated region
      $region25: #{one_block_forward.1} parent=23 // pred_check
        %p128 = pneg %p29
      $region26: #{one_block_forward.1} parent=23 // pred_check_branch
        %130 = sbr.rel (%p128) target = $region28
      $region27: #{one_block_forward.1} parent=23 // pred_region
        %p131 = scmp.lt.s32.totalorder %s9, 1
        %s132 = scalar_select %p131, %s9, 1
        %s133 = smul.addr %s132, 2
        %s134 = smul.addr %s133, 8
        %s135 = scalar_lea.vmem %s0, %s134
      $region28: #{one_block_forward.1} parent=23 // pred_fallthru
        _
    $region24: #{one_block_forward.1} parent=5 // pred_fallthru
      _
    %p136 = scmp.le.s32.totalorder 1, %s9
    %p137 = scmp.lt.s32.totalorder %s9, 3
    %p138 = pnand %p136, %p137
    %p139 = pneg %p138
    // Predicated region
    $region29: #{one_block_forward.1} parent=5 // pred_check
      _
    $region30: #{one_block_forward.1} parent=5 // pred_check_branch
      %141 = sbr.rel (%p138) target = $region32
    $region31: #{one_block_forward.1} parent=5 // pred_region
      %s142 = ssub.s32 %s9, 1
      %p143 = scmp.lt.s32.totalorder %s14, 1
      %s144 = scalar_select %p143, %s14, 1
      %s145 = smul.addr %s144, 2
      %s146 = smul.addr %s145, 8
      %s147 = scalar_lea.vmem %s0, %s146
      %p148 = pneg %p35
      %p149 = pneg %p32
      %p150 = pneg %p56
      %p151 = pneg %p53
      %p152 = pneg %p77
      %p153 = pneg %p74
      %p154 = pneg %p103
      %p155 = pneg %p100
      %p156 = scmp.lt.s32.totalorder %s14, 1
      %s157 = scalar_select %p156, %s14, 1
      %s158 = smul.addr %s157, 2
      %s159 = smul.addr %s158, 8
      %s160 = scalar_lea.vmem %s3, %s159
      %p161 = scmp.lt.s32.totalorder %s14, 1
      %s162 = scalar_select %p161, %s14, 1
      %s163 = smul.addr %s162, 2
      %s164 = smul.addr %s163, 8
      %s165 = scalar_lea.vmem %s0, %s164
      %p166 = scmp.lt.s32.totalorder %s14, 1
      %s167 = scalar_select %p166, %s14, 1
      %s168 = smul.addr %s167, 2
      %s169 = smul.addr %s168, 8
      %s170 = scalar_lea.vmem %s3, %s169
      %v171 = vlaneseq
      %v172 = vshrl.u32 %v171, 7
      %vm173 = vcmp.eq.s32.totalorder %v172, 0
      %v174 = vsel %vm173, 1, 0
      %v175 = vcvt.s32.f32 %v174
      %176 = vst [vmem:[#allocation2] sm:$0xff] %v175
      %177 = vst [vmem:[#allocation2 + $0x8] sm:$0xff] %v175
      %v178 = vld [vmem:[%s2] ss:$8 sm:$0x3]
      %s179 = scalar_lea.vmem %s2, 1
      %v180 = vld [vmem:[%s179] ss:$8 sm:$0x3]
      %s181 = scalar_lea.vmem %s2, 2
      %v182 = vld [vmem:[%s181] ss:$8 sm:$0x3]
      %s183 = scalar_lea.vmem %s2, 3
      %v184 = vld [vmem:[%s183] ss:$8 sm:$0x3]
      %s185 = scalar_lea.vmem %s2, 5
      %v186 = vld [vmem:[%s185] ss:$8 sm:$0x3]
      %s187 = scalar_lea.vmem %s2, 6
      %v188 = vld [vmem:[%s187] ss:$8 sm:$0x3]
      %s189 = scalar_lea.vmem %s2, 7
      %v190 = vld [vmem:[%s189] ss:$8 sm:$0x3]
      %s191 = scalar_lea.vmem %s2, 16
      %v192 = vld [vmem:[%s191] ss:$8 sm:$0x3]
      %v193 = vld [vmem:[%s165] sm:$0xff]
      %v194 = vld [vmem:[%s165 + $0x8] sm:$0xff]
      %195 = vrot.lane.b32.xlu0 %v193, 17
      %v196 = vpop.permute.xlu0 %195
      %197 = vrot.lane.b32.xlu0 %v194, 17
      %v198 = vpop.permute.xlu0 %197
      %v199 = vlaneseq
      %v200 = vand.u32 %v199, 127
      %vm201 = vcmp.lt.s32.totalorder %v200, 17
      %v202 = vsel %vm201, %v196, %v198
      %v203 = vsel %vm201, %v198, %v196
      %v205 = vlaneseq
      %v206 = vshrl.u32 %v205, 7
      %v207 = vsub.s32 0, %v206
      %v208 = vrot.slane %v178, %v207
      %v209 = vlaneseq
      %v210 = vshrl.u32 %v209, 7
      %v211 = vsub.s32 1, %v210
      %v212 = vrot.slane %v178, %v211
      %v215 = vmul.f32 %v203, %v208
      %v216 = vmul.f32 %v202, %v212
      %217 = vst [vmem:[#allocation2 + $0x10] sm:$0xff] %v215
      %218 = vst [vmem:[#allocation2 + $0x18] sm:$0xff] %v216
      %219 = vrot.lane.b32.xlu0 %v193, 16
      %v220 = vpop.permute.xlu0 %219
      %221 = vrot.lane.b32.xlu0 %v194, 16
      %v222 = vpop.permute.xlu0 %221
      %vm223 = vcmp.lt.s32.totalorder %v200, 16
      %v224 = vsel %vm223, %v220, %v222
      %v225 = vsel %vm223, %v222, %v220
      %v227 = vlaneseq
      %v228 = vshrl.u32 %v227, 7
      %v229 = vsub.s32 0, %v228
      %v230 = vrot.slane %v180, %v229
      %v231 = vlaneseq
      %v232 = vshrl.u32 %v231, 7
      %v233 = vsub.s32 1, %v232
      %v234 = vrot.slane %v180, %v233
      %v237 = vmul.f32 %v225, %v230
      %v238 = vmul.f32 %v224, %v234
      %239 = vst [vmem:[#allocation2 + $0x20] sm:$0xff] %v237
      %240 = vst [vmem:[#allocation2 + $0x28] sm:$0xff] %v238
      %241 = vrot.lane.b32.xlu0 %v193, 15
      %v242 = vpop.permute.xlu0 %241
      %243 = vrot.lane.b32.xlu0 %v194, 15
      %v244 = vpop.permute.xlu0 %243
      %vm245 = vcmp.lt.s32.totalorder %v200, 15
      %v246 = vsel %vm245, %v242, %v244
      %v247 = vsel %vm245, %v244, %v242
      %v249 = vlaneseq
      %v250 = vshrl.u32 %v249, 7
      %v251 = vsub.s32 0, %v250
      %v252 = vrot.slane %v182, %v251
      %v253 = vlaneseq
      %v254 = vshrl.u32 %v253, 7
      %v255 = vsub.s32 1, %v254
      %v256 = vrot.slane %v182, %v255
      %v259 = vmul.f32 %v247, %v252
      %v260 = vmul.f32 %v246, %v256
      %261 = vst [vmem:[#allocation2 + $0x30] sm:$0xff] %v259
      %262 = vst [vmem:[#allocation2 + $0x38] sm:$0xff] %v260
      %263 = vrot.lane.b32.xlu0 %v193, 1
      %v264 = vpop.permute.xlu0 %263
      %265 = vrot.lane.b32.xlu0 %v194, 1
      %v266 = vpop.permute.xlu0 %265
      %vm267 = vcmp.lt.s32.totalorder %v200, 1
      %v268 = vsel %vm267, %v264, %v266
      %v269 = vsel %vm267, %v266, %v264
      %v271 = vlaneseq
      %v272 = vshrl.u32 %v271, 7
      %v273 = vsub.s32 0, %v272
      %v274 = vrot.slane %v184, %v273
      %v275 = vlaneseq
      %v276 = vshrl.u32 %v275, 7
      %v277 = vsub.s32 1, %v276
      %v278 = vrot.slane %v184, %v277
      %v281 = vmul.f32 %v269, %v274
      %v282 = vmul.f32 %v268, %v278
      %283 = vst [vmem:[#allocation2 + $0x40] sm:$0xff] %v281
      %284 = vst [vmem:[#allocation2 + $0x48] sm:$0xff] %v282
      %285 = vst [vmem:[#allocation2 + $0x50] sm:$0xff] %v193
      %286 = vst [vmem:[#allocation2 + $0x58] sm:$0xff] %v194
      %287 = vrot.lane.b32.xlu0 %v193, 127
      %v288 = vpop.permute.xlu0 %287
      %289 = vrot.lane.b32.xlu0 %v194, 127
      %v290 = vpop.permute.xlu0 %289
      %vm291 = vcmp.lt.s32.totalorder %v200, 127
      %v292 = vsel %vm291, %v288, %v290
      %v293 = vsel %vm291, %v290, %v288
      %v295 = vlaneseq
      %v296 = vshrl.u32 %v295, 7
      %v297 = vsub.s32 0, %v296
      %v298 = vrot.slane %v186, %v297
      %v299 = vlaneseq
      %v300 = vshrl.u32 %v299, 7
      %v301 = vsub.s32 1, %v300
      %v302 = vrot.slane %v186, %v301
      %v305 = vmul.f32 %v292, %v298
      %v306 = vmul.f32 %v293, %v302
      %307 = vst [vmem:[#allocation2 + $0x60] sm:$0xff] %v305
      %308 = vst [vmem:[#allocation2 + $0x68] sm:$0xff] %v306
      %309 = vrot.lane.b32.xlu0 %v193, 113
      %v310 = vpop.permute.xlu0 %309
      %311 = vrot.lane.b32.xlu0 %v194, 113
      %v312 = vpop.permute.xlu0 %311
      %vm313 = vcmp.lt.s32.totalorder %v200, 113
      %v314 = vsel %vm313, %v310, %v312
      %v315 = vsel %vm313, %v312, %v310
      %v317 = vlaneseq
      %v318 = vshrl.u32 %v317, 7
      %v319 = vsub.s32 0, %v318
      %v320 = vrot.slane %v188, %v319
      %v321 = vlaneseq
      %v322 = vshrl.u32 %v321, 7
      %v323 = vsub.s32 1, %v322
      %v324 = vrot.slane %v188, %v323
      %v327 = vmul.f32 %v314, %v320
      %v328 = vmul.f32 %v315, %v324
      %329 = vst [vmem:[#allocation2 + $0x70] sm:$0xff] %v327
      %330 = vst [vmem:[#allocation2 + $0x78] sm:$0xff] %v328
      %331 = vrot.lane.b32.xlu0 %v193, 112
      %v332 = vpop.permute.xlu0 %331
      %333 = vrot.lane.b32.xlu0 %v194, 112
      %v334 = vpop.permute.xlu0 %333
      %vm335 = vcmp.lt.s32.totalorder %v200, 112
      %v336 = vsel %vm335, %v332, %v334
      %v337 = vsel %vm335, %v334, %v332
      %v339 = vlaneseq
      %v340 = vshrl.u32 %v339, 7
      %v341 = vsub.s32 0, %v340
      %v342 = vrot.slane %v190, %v341
      %v343 = vlaneseq
      %v344 = vshrl.u32 %v343, 7
      %v345 = vsub.s32 1, %v344
      %v346 = vrot.slane %v190, %v345
      %v349 = vmul.f32 %v336, %v342
      %v350 = vmul.f32 %v337, %v346
      %351 = vst [vmem:[#allocation2 + $0x80] sm:$0xff] %v349
      %352 = vst [vmem:[#allocation2 + $0x88] sm:$0xff] %v350
      %353 = vrot.lane.b32.xlu0 %v193, 111
      %v354 = vpop.permute.xlu0 %353
      %355 = vrot.lane.b32.xlu0 %v194, 111
      %v356 = vpop.permute.xlu0 %355
      %vm357 = vcmp.lt.s32.totalorder %v200, 111
      %v358 = vsel %vm357, %v354, %v356
      %v359 = vsel %vm357, %v356, %v354
      %v361 = vlaneseq
      %v362 = vshrl.u32 %v361, 7
      %v363 = vsub.s32 0, %v362
      %v364 = vrot.slane %v192, %v363
      %v365 = vlaneseq
      %v366 = vshrl.u32 %v365, 7
      %v367 = vsub.s32 1, %v366
      %v368 = vrot.slane %v192, %v367
      %v371 = vmul.f32 %v358, %v364
      %v372 = vmul.f32 %v359, %v368
      %373 = vst [vmem:[#allocation2 + $0x90] sm:$0xff] %v371
      %374 = vst [vmem:[#allocation2 + $0x98] sm:$0xff] %v372
      %v375 = vld [vmem:[%s1] sm:$0xff]
      %v376 = vld [vmem:[#allocation2] sm:$0xff]
      %v377 = vld [vmem:[#allocation2 + $0x8] sm:$0xff]
      %v378 = vld [vmem:[#allocation2 + $0x10] sm:$0xff]
      %v379 = vld [vmem:[#allocation2 + $0x18] sm:$0xff]
      %v380 = vld [vmem:[#allocation2 + $0x20] sm:$0xff]
      %v381 = vld [vmem:[#allocation2 + $0x28] sm:$0xff]
      %v382 = vld [vmem:[#allocation2 + $0x30] sm:$0xff]
      %v383 = vld [vmem:[#allocation2 + $0x38] sm:$0xff]
      %v384 = vld [vmem:[#allocation2 + $0x40] sm:$0xff]
      %v385 = vld [vmem:[#allocation2 + $0x48] sm:$0xff]
      %v386 = vld [vmem:[#allocation2 + $0x50] sm:$0xff]
      %v387 = vld [vmem:[#allocation2 + $0x58] sm:$0xff]
      %v388 = vld [vmem:[#allocation2 + $0x60] sm:$0xff]
      %v389 = vld [vmem:[#allocation2 + $0x68] sm:$0xff]
      %v390 = vld [vmem:[#allocation2 + $0x70] sm:$0xff]
      %v391 = vld [vmem:[#allocation2 + $0x78] sm:$0xff]
      %v392 = vld [vmem:[#allocation2 + $0x80] sm:$0xff]
      %v393 = vld [vmem:[#allocation2 + $0x88] sm:$0xff]
      %v394 = vld [vmem:[#allocation2 + $0x90] sm:$0xff]
      %v395 = vld [vmem:[#allocation2 + $0x98] sm:$0xff]
      %vm396 = vcmask 654336
      %v398 = vsel %vm396, %v375, 0
      %400 = vmatprep.subr.mxu0 %v377
      %401 = vmatpush1.msra.mxu0 %v376
      %402 = vmatprep.subr.mxu0 %v379
      %403 = vmatpush1.msra.mxu0 %v378
      %404 = vmatprep.subr.mxu0 %v381
      %405 = vmatpush1.msra.mxu0 %v380
      %406 = vmatprep.subr.mxu0 %v383
      %407 = vmatpush1.msra.mxu0 %v382
      %408 = vmatprep.subr.mxu0 %v385
      %409 = vmatpush1.msra.mxu0 %v384
      %410 = vmatprep.subr.mxu0 %v387
      %411 = vmatpush1.msra.mxu0 %v386
      %412 = vmatprep.subr.mxu0 %v389
      %413 = vmatpush1.msra.mxu0 %v388
      %414 = vmatprep.subr.mxu0 %v391
      %415 = vmatpush1.msra.mxu0 %v390
      %416 = vmatprep.subr.mxu0 %v393
      %417 = vmatpush1.msra.mxu0 %v392
      %418 = vmatprep.subr.mxu0 %v395
      %419 = vmatpush1.msra.mxu0 %v394
      %420 = vmatprep.subr.mxu0 0.0
      %421 = vmatpush1.msra.mxu0 0.0
      %422 = vmatprep.subr.mxu0 0.0
      %423 = vmatpush1.msra.mxu0 0.0
      %424 = vmatprep.subr.mxu0 0.0
      %425 = vmatpush1.msra.mxu0 0.0
      %426 = vmatprep.subr.mxu0 0.0
      %427 = vmatpush1.msra.mxu0 0.0
      %428 = vmatprep.subr.mxu0 0.0
      %429 = vmatpush1.msra.mxu0 0.0
      %430 = vmatprep.subr.mxu0 0.0
      %431 = vmatpush1.msra.mxu0 0.0
      %432 = vmatprep.subr.mxu0 0.0
      %433 = vmatpush1.msra.mxu0 0.0
      %434 = vmatprep.subr.mxu0 0.0
      %435 = vmatpush1.msra.mxu0 0.0
      %436 = vmatprep.subr.mxu0 0.0
      %437 = vmatpush1.msra.mxu0 0.0
      %438 = vmatprep.subr.mxu0 0.0
      %439 = vmatpush1.msra.mxu0 0.0
      %440 = vmatprep.subr.mxu0 0.0
      %441 = vmatpush1.msra.mxu0 0.0
      %442 = vmatprep.subr.mxu0 0.0
      %443 = vmatpush1.msra.mxu0 0.0
      %444 = vmatprep.subr.mxu0 0.0
      %445 = vmatpush1.msra.mxu0 0.0
      %446 = vmatprep.subr.mxu0 0.0
      %447 = vmatpush1.msra.mxu0 0.0
      %448 = vmatprep.subr.mxu0 0.0
      %449 = vmatpush1.msra.mxu0 0.0
      %450 = vmatprep.subr.mxu0 0.0
      %451 = vmatpush1.msra.mxu0 0.0
      %452 = vmatprep.subr.mxu0 0.0
      %453 = vmatpush1.msra.mxu0 0.0
      %454 = vmatprep.subr.mxu0 0.0
      %455 = vmatpush1.msra.mxu0 0.0
      %456 = vmatprep.subr.mxu0 0.0
      %457 = vmatpush1.msra.mxu0 0.0
      %458 = vmatprep.subr.mxu0 0.0
      %459 = vmatpush1.msra.mxu0 0.0
      %460 = vmatprep.subr.mxu0 0.0
      %461 = vmatpush1.msra.mxu0 0.0
      %462 = vmatprep.subr.mxu0 0.0
      %463 = vmatpush1.msra.mxu0 0.0
      %464 = vmatprep.mubr.f32.mxu0 0.0
      %465 = vmatmul.mubr.f32.gmra.mrb[0].mxu0 %v398
      %v466 = vpop.f32.mrb[0].mxu0
      %v467 = vadd.f32 0.0, %v466
      %v468 = vpop.f32.mrb[0].mxu0
      %v469 = vadd.f32 0.0, %v468
      %470 = vdwg.mxu0
      %471 = vrot.lane.b32.xlu0 %v467, 17
      %v472 = vpop.permute.xlu0 %471
      %473 = vrot.lane.b32.xlu0 %v469, 17
      %v474 = vpop.permute.xlu0 %473
      %v475 = vsel %vm201, %v472, %v474
      %v476 = vsel %vm201, %v474, %v472
      %v477 = vmul.f32 %v476, %v208
      %v478 = vmul.f32 %v475, %v212
      %479 = vst [vmem:[#allocation2 + $0xa0] sm:$0xff] %v477
      %480 = vst [vmem:[#allocation2 + $0xa8] sm:$0xff] %v478
      %481 = vrot.lane.b32.xlu0 %v467, 16
      %v482 = vpop.permute.xlu0 %481
      %483 = vrot.lane.b32.xlu0 %v469, 16
      %v484 = vpop.permute.xlu0 %483
      %v485 = vsel %vm223, %v482, %v484
      %v486 = vsel %vm223, %v484, %v482
      %v487 = vmul.f32 %v486, %v230
      %v488 = vmul.f32 %v485, %v234
      %489 = vst [vmem:[#allocation2 + $0xb0] sm:$0xff] %v487
      %490 = vst [vmem:[#allocation2 + $0xb8] sm:$0xff] %v488
      %491 = vrot.lane.b32.xlu0 %v467, 15
      %v492 = vpop.permute.xlu0 %491
      %493 = vrot.lane.b32.xlu0 %v469, 15
      %v494 = vpop.permute.xlu0 %493
      %v495 = vsel %vm245, %v492, %v494
      %v496 = vsel %vm245, %v494, %v492
      %v497 = vmul.f32 %v496, %v252
      %v498 = vmul.f32 %v495, %v256
      %499 = vst [vmem:[#allocation2 + $0xc0] sm:$0xff] %v497
      %500 = vst [vmem:[#allocation2 + $0xc8] sm:$0xff] %v498
      %501 = vrot.lane.b32.xlu0 %v467, 1
      %v502 = vpop.permute.xlu0 %501
      %503 = vrot.lane.b32.xlu0 %v469, 1
      %v504 = vpop.permute.xlu0 %503
      %v505 = vsel %vm267, %v502, %v504
      %v506 = vsel %vm267, %v504, %v502
      %v507 = vmul.f32 %v506, %v274
      %v508 = vmul.f32 %v505, %v278
      %509 = vst [vmem:[#allocation2 + $0xd0] sm:$0xff] %v507
      %510 = vst [vmem:[#allocation2 + $0xd8] sm:$0xff] %v508
      %511 = vst [vmem:[#allocation2 + $0xe0] sm:$0xff] %v467
      %512 = vst [vmem:[#allocation2 + $0xe8] sm:$0xff] %v469
      %513 = vrot.lane.b32.xlu0 %v467, 127
      %v514 = vpop.permute.xlu0 %513
      %515 = vrot.lane.b32.xlu0 %v469, 127
      %v516 = vpop.permute.xlu0 %515
      %v517 = vsel %vm291, %v514, %v516
      %v518 = vsel %vm291, %v516, %v514
      %v519 = vmul.f32 %v517, %v298
      %v520 = vmul.f32 %v518, %v302
      %521 = vst [vmem:[#allocation2 + $0xf0] sm:$0xff] %v519
      %522 = vst [vmem:[#allocation2 + $0xf8] sm:$0xff] %v520
      %523 = vrot.lane.b32.xlu0 %v467, 113
      %v524 = vpop.permute.xlu0 %523
      %525 = vrot.lane.b32.xlu0 %v469, 113
      %v526 = vpop.permute.xlu0 %525
      %v527 = vsel %vm313, %v524, %v526
      %v528 = vsel %vm313, %v526, %v524
      %v529 = vmul.f32 %v527, %v320
      %v530 = vmul.f32 %v528, %v324
      %531 = vst [vmem:[#allocation2 + $0x100] sm:$0xff] %v529
      %532 = vst [vmem:[#allocation2 + $0x108] sm:$0xff] %v530
      %533 = vrot.lane.b32.xlu0 %v467, 112
      %v534 = vpop.permute.xlu0 %533
      %535 = vrot.lane.b32.xlu0 %v469, 112
      %v536 = vpop.permute.xlu0 %535
      %v537 = vsel %vm335, %v534, %v536
      %v538 = vsel %vm335, %v536, %v534
      %v539 = vmul.f32 %v537, %v342
      %v540 = vmul.f32 %v538, %v346
      %541 = vst [vmem:[#allocation2 + $0x110] sm:$0xff] %v539
      %542 = vst [vmem:[#allocation2 + $0x118] sm:$0xff] %v540
      %543 = vrot.lane.b32.xlu0 %v467, 111
      %v544 = vpop.permute.xlu0 %543
      %545 = vrot.lane.b32.xlu0 %v469, 111
      %v546 = vpop.permute.xlu0 %545
      %v547 = vsel %vm357, %v544, %v546
      %v548 = vsel %vm357, %v546, %v544
      %v549 = vmul.f32 %v547, %v364
      %v550 = vmul.f32 %v548, %v368
      %551 = vst [vmem:[#allocation2 + $0x120] sm:$0xff] %v549
      %552 = vst [vmem:[#allocation2 + $0x128] sm:$0xff] %v550
      %s553 = scalar_lea.vmem %s1, 32
      %v554 = vld [vmem:[%s553] sm:$0xff]
      %v555 = vld [vmem:[%s553 + $0x8] sm:$0xff]
      %v556 = vld [vmem:[#allocation2] sm:$0xff]
      %v557 = vld [vmem:[#allocation2 + $0x8] sm:$0xff]
      %v558 = vld [vmem:[#allocation2 + $0x10] sm:$0xff]
      %v559 = vld [vmem:[#allocation2 + $0x18] sm:$0xff]
      %v560 = vld [vmem:[#allocation2 + $0x20] sm:$0xff]
      %v561 = vld [vmem:[#allocation2 + $0x28] sm:$0xff]
      %v562 = vld [vmem:[#allocation2 + $0x30] sm:$0xff]
      %v563 = vld [vmem:[#allocation2 + $0x38] sm:$0xff]
      %v564 = vld [vmem:[#allocation2 + $0x40] sm:$0xff]
      %v565 = vld [vmem:[#allocation2 + $0x48] sm:$0xff]
      %v566 = vld [vmem:[#allocation2 + $0x50] sm:$0xff]
      %v567 = vld [vmem:[#allocation2 + $0x58] sm:$0xff]
      %v568 = vld [vmem:[#allocation2 + $0x60] sm:$0xff]
      %v569 = vld [vmem:[#allocation2 + $0x68] sm:$0xff]
      %v570 = vld [vmem:[#allocation2 + $0x70] sm:$0xff]
      %v571 = vld [vmem:[#allocation2 + $0x78] sm:$0xff]
      %v572 = vld [vmem:[#allocation2 + $0x80] sm:$0xff]
      %v573 = vld [vmem:[#allocation2 + $0x88] sm:$0xff]
      %v574 = vld [vmem:[#allocation2 + $0x90] sm:$0xff]
      %v575 = vld [vmem:[#allocation2 + $0x98] sm:$0xff]
      %v576 = vld [vmem:[#allocation2 + $0xa0] sm:$0xff]
      %v577 = vld [vmem:[#allocation2 + $0xa8] sm:$0xff]
      %v578 = vld [vmem:[#allocation2 + $0xb0] sm:$0xff]
      %v579 = vld [vmem:[#allocation2 + $0xb8] sm:$0xff]
      %v580 = vld [vmem:[#allocation2 + $0xc0] sm:$0xff]
      %v581 = vld [vmem:[#allocation2 + $0xc8] sm:$0xff]
      %v582 = vld [vmem:[#allocation2 + $0xd0] sm:$0xff]
      %v583 = vld [vmem:[#allocation2 + $0xd8] sm:$0xff]
      %v584 = vld [vmem:[#allocation2 + $0xe0] sm:$0xff]
      %v585 = vld [vmem:[#allocation2 + $0xe8] sm:$0xff]
      %v586 = vld [vmem:[#allocation2 + $0xf0] sm:$0xff]
      %v587 = vld [vmem:[#allocation2 + $0xf8] sm:$0xff]
      %v588 = vld [vmem:[#allocation2 + $0x100] sm:$0xff]
      %v589 = vld [vmem:[#allocation2 + $0x108] sm:$0xff]
      %v590 = vld [vmem:[#allocation2 + $0x110] sm:$0xff]
      %v591 = vld [vmem:[#allocation2 + $0x118] sm:$0xff]
      %v592 = vld [vmem:[#allocation2 + $0x120] sm:$0xff]
      %v593 = vld [vmem:[#allocation2 + $0x128] sm:$0xff]
      %vm594 = vcmask 195584
      %v596 = vsel %vm594, %v555, 0
      %598 = vmatprep.subr.mxu0 %v557
      %599 = vmatpush1.msra.mxu0 %v556
      %600 = vmatprep.subr.mxu0 %v559
      %601 = vmatpush1.msra.mxu0 %v558
      %602 = vmatprep.subr.mxu0 %v561
      %603 = vmatpush1.msra.mxu0 %v560
      %604 = vmatprep.subr.mxu0 %v563
      %605 = vmatpush1.msra.mxu0 %v562
      %606 = vmatprep.subr.mxu0 %v565
      %607 = vmatpush1.msra.mxu0 %v564
      %608 = vmatprep.subr.mxu0 %v567
      %609 = vmatpush1.msra.mxu0 %v566
      %610 = vmatprep.subr.mxu0 %v569
      %611 = vmatpush1.msra.mxu0 %v568
      %612 = vmatprep.subr.mxu0 %v571
      %613 = vmatpush1.msra.mxu0 %v570
      %614 = vmatprep.subr.mxu0 %v573
      %615 = vmatpush1.msra.mxu0 %v572
      %616 = vmatprep.subr.mxu0 %v575
      %617 = vmatpush1.msra.mxu0 %v574
      %618 = vmatprep.subr.mxu0 %v577
      %619 = vmatpush1.msra.mxu0 %v576
      %620 = vmatprep.subr.mxu0 %v579
      %621 = vmatpush1.msra.mxu0 %v578
      %622 = vmatprep.subr.mxu0 %v581
      %623 = vmatpush1.msra.mxu0 %v580
      %624 = vmatprep.subr.mxu0 %v583
      %625 = vmatpush1.msra.mxu0 %v582
      %626 = vmatprep.subr.mxu0 %v585
      %627 = vmatpush1.msra.mxu0 %v584
      %628 = vmatprep.subr.mxu0 %v587
      %629 = vmatpush1.msra.mxu0 %v586
      %630 = vmatprep.subr.mxu0 %v589
      %631 = vmatpush1.msra.mxu0 %v588
      %632 = vmatprep.subr.mxu0 %v591
      %633 = vmatpush1.msra.mxu0 %v590
      %634 = vmatprep.subr.mxu0 %v593
      %635 = vmatpush1.msra.mxu0 %v592
      %636 = vmatprep.subr.mxu0 0.0
      %637 = vmatpush1.msra.mxu0 0.0
      %638 = vmatprep.subr.mxu0 0.0
      %639 = vmatpush1.msra.mxu0 0.0
      %640 = vmatprep.subr.mxu0 0.0
      %641 = vmatpush1.msra.mxu0 0.0
      %642 = vmatprep.subr.mxu0 0.0
      %643 = vmatpush1.msra.mxu0 0.0
      %644 = vmatprep.subr.mxu0 0.0
      %645 = vmatpush1.msra.mxu0 0.0
      %646 = vmatprep.subr.mxu0 0.0
      %647 = vmatpush1.msra.mxu0 0.0
      %648 = vmatprep.subr.mxu0 0.0
      %649 = vmatpush1.msra.mxu0 0.0
      %650 = vmatprep.subr.mxu0 0.0
      %651 = vmatpush1.msra.mxu0 0.0
      %652 = vmatprep.subr.mxu0 0.0
      %653 = vmatpush1.msra.mxu0 0.0
      %654 = vmatprep.subr.mxu0 0.0
      %655 = vmatpush1.msra.mxu0 0.0
      %656 = vmatprep.subr.mxu0 0.0
      %657 = vmatpush1.msra.mxu0 0.0
      %658 = vmatprep.subr.mxu0 0.0
      %659 = vmatpush1.msra.mxu0 0.0
      %660 = vmatprep.subr.mxu0 0.0
      %661 = vmatpush1.msra.mxu0 0.0
      %662 = vmatprep.mubr.f32.mxu0 %v596
      %663 = vmatmul.mubr.f32.gmra.mrb[0].mxu0 %v554
      %v664 = vpop.f32.mrb[0].mxu0
      %v665 = vadd.f32 0.0, %v664
      %v666 = vpop.f32.mrb[0].mxu0
      %v667 = vadd.f32 0.0, %v666
      %668 = vdwg.mxu0
      %669 = vrot.lane.b32.xlu0 %v665, 17
      %v670 = vpop.permute.xlu0 %669
      %671 = vrot.lane.b32.xlu0 %v667, 17
      %v672 = vpop.permute.xlu0 %671
      %v673 = vsel %vm201, %v670, %v672
      %v674 = vsel %vm201, %v672, %v670
      %v675 = vmul.f32 %v674, %v208
      %v676 = vmul.f32 %v673, %v212
      %677 = vst [vmem:[#allocation2 + $0x130] sm:$0xff] %v675
      %678 = vst [vmem:[#allocation2 + $0x138] sm:$0xff] %v676
      %679 = vrot.lane.b32.xlu0 %v665, 16
      %v680 = vpop.permute.xlu0 %679
      %681 = vrot.lane.b32.xlu0 %v667, 16
      %v682 = vpop.permute.xlu0 %681
      %v683 = vsel %vm223, %v680, %v682
      %v684 = vsel %vm223, %v682, %v680
      %v685 = vmul.f32 %v684, %v230
      %v686 = vmul.f32 %v683, %v234
      %687 = vst [vmem:[#allocation2 + $0x140] sm:$0xff] %v685
      %688 = vst [vmem:[#allocation2 + $0x148] sm:$0xff] %v686
      %689 = vrot.lane.b32.xlu0 %v665, 15
      %v690 = vpop.permute.xlu0 %689
      %691 = vrot.lane.b32.xlu0 %v667, 15
      %v692 = vpop.permute.xlu0 %691
      %v693 = vsel %vm245, %v690, %v692
      %v694 = vsel %vm245, %v692, %v690
      %v695 = vmul.f32 %v694, %v252
      %v696 = vmul.f32 %v693, %v256
      %697 = vst [vmem:[#allocation2 + $0x150] sm:$0xff] %v695
      %698 = vst [vmem:[#allocation2 + $0x158] sm:$0xff] %v696
      %699 = vrot.lane.b32.xlu0 %v665, 1
      %v700 = vpop.permute.xlu0 %699
      %701 = vrot.lane.b32.xlu0 %v667, 1
      %v702 = vpop.permute.xlu0 %701
      %v703 = vsel %vm267, %v700, %v702
      %v704 = vsel %vm267, %v702, %v700
      %v705 = vmul.f32 %v704, %v274
      %v706 = vmul.f32 %v703, %v278
      %707 = vst [vmem:[#allocation2 + $0x160] sm:$0xff] %v705
      %708 = vst [vmem:[#allocation2 + $0x168] sm:$0xff] %v706
      %709 = vst [vmem:[#allocation2 + $0x170] sm:$0xff] %v665
      %710 = vst [vmem:[#allocation2 + $0x178] sm:$0xff] %v667
      %711 = vrot.lane.b32.xlu0 %v665, 127
      %v712 = vpop.permute.xlu0 %711
      %713 = vrot.lane.b32.xlu0 %v667, 127
      %v714 = vpop.permute.xlu0 %713
      %v715 = vsel %vm291, %v712, %v714
      %v716 = vsel %vm291, %v714, %v712
      %v717 = vmul.f32 %v715, %v298
      %v718 = vmul.f32 %v716, %v302
      %719 = vst [vmem:[#allocation2 + $0x180] sm:$0xff] %v717
      %720 = vst [vmem:[#allocation2 + $0x188] sm:$0xff] %v718
      %721 = vrot.lane.b32.xlu0 %v665, 113
      %v722 = vpop.permute.xlu0 %721
      %723 = vrot.lane.b32.xlu0 %v667, 113
      %v724 = vpop.permute.xlu0 %723
      %v725 = vsel %vm313, %v722, %v724
      %v726 = vsel %vm313, %v724, %v722
      %v727 = vmul.f32 %v725, %v320
      %v728 = vmul.f32 %v726, %v324
      %729 = vst [vmem:[#allocation2 + $0x190] sm:$0xff] %v727
      %730 = vst [vmem:[#allocation2 + $0x198] sm:$0xff] %v728
      %731 = vrot.lane.b32.xlu0 %v665, 112
      %v732 = vpop.permute.xlu0 %731
      %733 = vrot.lane.b32.xlu0 %v667, 112
      %v734 = vpop.permute.xlu0 %733
      %v735 = vsel %vm335, %v732, %v734
      %v736 = vsel %vm335, %v734, %v732
      %v737 = vmul.f32 %v735, %v342
      %v738 = vmul.f32 %v736, %v346
      %739 = vst [vmem:[#allocation2 + $0x1a0] sm:$0xff] %v737
      %740 = vst [vmem:[#allocation2 + $0x1a8] sm:$0xff] %v738
      %741 = vrot.lane.b32.xlu0 %v665, 111
      %v742 = vpop.permute.xlu0 %741
      %743 = vrot.lane.b32.xlu0 %v667, 111
      %v744 = vpop.permute.xlu0 %743
      %v745 = vsel %vm357, %v742, %v744
      %v746 = vsel %vm357, %v744, %v742
      %v747 = vmul.f32 %v745, %v364
      %v748 = vmul.f32 %v746, %v368
      %749 = vst [vmem:[#allocation2 + $0x1b0] sm:$0xff] %v747
      %750 = vst [vmem:[#allocation2 + $0x1b8] sm:$0xff] %v748
      %s751 = scalar_lea.vmem %s1, 64
      %v752 = vld [vmem:[%s751] sm:$0xff]
      %v753 = vld [vmem:[%s751 + $0x8] sm:$0xff]
      %v754 = vld [vmem:[#allocation2] sm:$0xff]
      %v755 = vld [vmem:[#allocation2 + $0x8] sm:$0xff]
      %v756 = vld [vmem:[#allocation2 + $0x10] sm:$0xff]
      %v757 = vld [vmem:[#allocation2 + $0x18] sm:$0xff]
      %v758 = vld [vmem:[#allocation2 + $0x20] sm:$0xff]
      %v759 = vld [vmem:[#allocation2 + $0x28] sm:$0xff]
      %v760 = vld [vmem:[#allocation2 + $0x30] sm:$0xff]
      %v761 = vld [vmem:[#allocation2 + $0x38] sm:$0xff]
      %v762 = vld [vmem:[#allocation2 + $0x40] sm:$0xff]
      %v763 = vld [vmem:[#allocation2 + $0x48] sm:$0xff]
      %v764 = vld [vmem:[#allocation2 + $0x50] sm:$0xff]
      %v765 = vld [vmem:[#allocation2 + $0x58] sm:$0xff]
      %v766 = vld [vmem:[#allocation2 + $0x60] sm:$0xff]
      %v767 = vld [vmem:[#allocation2 + $0x68] sm:$0xff]
      %v768 = vld [vmem:[#allocation2 + $0x70] sm:$0xff]
      %v769 = vld [vmem:[#allocation2 + $0x78] sm:$0xff]
      %v770 = vld [vmem:[#allocation2 + $0x80] sm:$0xff]
      %v771 = vld [vmem:[#allocation2 + $0x88] sm:$0xff]
      %v772 = vld [vmem:[#allocation2 + $0x90] sm:$0xff]
      %v773 = vld [vmem:[#allocation2 + $0x98] sm:$0xff]
      %v774 = vld [vmem:[#allocation2 + $0xa0] sm:$0xff]
      %v775 = vld [vmem:[#allocation2 + $0xa8] sm:$0xff]
      %v776 = vld [vmem:[#allocation2 + $0xb0] sm:$0xff]
      %v777 = vld [vmem:[#allocation2 + $0xb8] sm:$0xff]
      %v778 = vld [vmem:[#allocation2 + $0xc0] sm:$0xff]
      %v779 = vld [vmem:[#allocation2 + $0xc8] sm:$0xff]
      %v780 = vld [vmem:[#allocation2 + $0xd0] sm:$0xff]
      %v781 = vld [vmem:[#allocation2 + $0xd8] sm:$0xff]
      %v782 = vld [vmem:[#allocation2 + $0xe0] sm:$0xff]
      %v783 = vld [vmem:[#allocation2 + $0xe8] sm:$0xff]
      %v784 = vld [vmem:[#allocation2 + $0xf0] sm:$0xff]
      %v785 = vld [vmem:[#allocation2 + $0xf8] sm:$0xff]
      %v786 = vld [vmem:[#allocation2 + $0x100] sm:$0xff]
      %v787 = vld [vmem:[#allocation2 + $0x108] sm:$0xff]
      %v788 = vld [vmem:[#allocation2 + $0x110] sm:$0xff]
      %v789 = vld [vmem:[#allocation2 + $0x118] sm:$0xff]
      %v790 = vld [vmem:[#allocation2 + $0x120] sm:$0xff]
      %v791 = vld [vmem:[#allocation2 + $0x128] sm:$0xff]
      %v792 = vld [vmem:[#allocation2 + $0x130] sm:$0xff]
      %v793 = vld [vmem:[#allocation2 + $0x138] sm:$0xff]
      %v794 = vld [vmem:[#allocation2 + $0x140] sm:$0xff]
      %v795 = vld [vmem:[#allocation2 + $0x148] sm:$0xff]
      %v796 = vld [vmem:[#allocation2 + $0x150] sm:$0xff]
      %v797 = vld [vmem:[#allocation2 + $0x158] sm:$0xff]
      %v798 = vld [vmem:[#allocation2 + $0x160] sm:$0xff]
      %v799 = vld [vmem:[#allocation2 + $0x168] sm:$0xff]
      %v800 = vld [vmem:[#allocation2 + $0x170] sm:$0xff]
      %v801 = vld [vmem:[#allocation2 + $0x178] sm:$0xff]
      %v802 = vld [vmem:[#allocation2 + $0x180] sm:$0xff]
      %v803 = vld [vmem:[#allocation2 + $0x188] sm:$0xff]
      %v804 = vld [vmem:[#allocation2 + $0x190] sm:$0xff]
      %v805 = vld [vmem:[#allocation2 + $0x198] sm:$0xff]
      %v806 = vld [vmem:[#allocation2 + $0x1a0] sm:$0xff]
      %v807 = vld [vmem:[#allocation2 + $0x1a8] sm:$0xff]
      %v808 = vld [vmem:[#allocation2 + $0x1b0] sm:$0xff]
      %v809 = vld [vmem:[#allocation2 + $0x1b8] sm:$0xff]
      %vm810 = vcmask 785408
      %v812 = vsel %vm810, %v753, 0
      %814 = vmatprep.subr.mxu0 %v755
      %815 = vmatpush1.msra.mxu0 %v754
      %816 = vmatprep.subr.mxu0 %v757
      %817 = vmatpush1.msra.mxu0 %v756
      %818 = vmatprep.subr.mxu0 %v759
      %819 = vmatpush1.msra.mxu0 %v758
      %820 = vmatprep.subr.mxu0 %v761
      %821 = vmatpush1.msra.mxu0 %v760
      %822 = vmatprep.subr.mxu0 %v763
      %823 = vmatpush1.msra.mxu0 %v762
      %824 = vmatprep.subr.mxu0 %v765
      %825 = vmatpush1.msra.mxu0 %v764
      %826 = vmatprep.subr.mxu0 %v767
      %827 = vmatpush1.msra.mxu0 %v766
      %828 = vmatprep.subr.mxu0 %v769
      %829 = vmatpush1.msra.mxu0 %v768
      %830 = vmatprep.subr.mxu0 %v771
      %831 = vmatpush1.msra.mxu0 %v770
      %832 = vmatprep.subr.mxu0 %v773
      %833 = vmatpush1.msra.mxu0 %v772
      %834 = vmatprep.subr.mxu0 %v775
      %835 = vmatpush1.msra.mxu0 %v774
      %836 = vmatprep.subr.mxu0 %v777
      %837 = vmatpush1.msra.mxu0 %v776
      %838 = vmatprep.subr.mxu0 %v779
      %839 = vmatpush1.msra.mxu0 %v778
      %840 = vmatprep.subr.mxu0 %v781
      %841 = vmatpush1.msra.mxu0 %v780
      %842 = vmatprep.subr.mxu0 %v783
      %843 = vmatpush1.msra.mxu0 %v782
      %844 = vmatprep.subr.mxu0 %v785
      %845 = vmatpush1.msra.mxu0 %v784
      %846 = vmatprep.subr.mxu0 %v787
      %847 = vmatpush1.msra.mxu0 %v786
      %848 = vmatprep.subr.mxu0 %v789
      %849 = vmatpush1.msra.mxu0 %v788
      %850 = vmatprep.subr.mxu0 %v791
      %851 = vmatpush1.msra.mxu0 %v790
      %852 = vmatprep.subr.mxu0 %v793
      %853 = vmatpush1.msra.mxu0 %v792
      %854 = vmatprep.subr.mxu0 %v795
      %855 = vmatpush1.msra.mxu0 %v794
      %856 = vmatprep.subr.mxu0 %v797
      %857 = vmatpush1.msra.mxu0 %v796
      %858 = vmatprep.subr.mxu0 %v799
      %859 = vmatpush1.msra.mxu0 %v798
      %860 = vmatprep.subr.mxu0 %v801
      %861 = vmatpush1.msra.mxu0 %v800
      %862 = vmatprep.subr.mxu0 %v803
      %863 = vmatpush1.msra.mxu0 %v802
      %864 = vmatprep.subr.mxu0 %v805
      %865 = vmatpush1.msra.mxu0 %v804
      %866 = vmatprep.subr.mxu0 %v807
      %867 = vmatpush1.msra.mxu0 %v806
      %868 = vmatprep.subr.mxu0 %v809
      %869 = vmatpush1.msra.mxu0 %v808
      %870 = vmatprep.subr.mxu0 0.0
      %871 = vmatpush1.msra.mxu0 0.0
      %872 = vmatprep.subr.mxu0 0.0
      %873 = vmatpush1.msra.mxu0 0.0
      %874 = vmatprep.subr.mxu0 0.0
      %875 = vmatpush1.msra.mxu0 0.0
      %876 = vmatprep.subr.mxu0 0.0
      %877 = vmatpush1.msra.mxu0 0.0
      %878 = vmatprep.mubr.f32.mxu0 %v812
      %879 = vmatmul.mubr.f32.gmra.mrb[0].mxu0 %v752
      %v880 = vpop.f32.mrb[0].mxu0
      %v881 = vadd.f32 0.0, %v880
      %v882 = vpop.f32.mrb[0].mxu0
      %v883 = vadd.f32 0.0, %v882
      %884 = vdwg.mxu0
      %885 = vrot.lane.b32.xlu0 %v881, 17
      %v886 = vpop.permute.xlu0 %885
      %887 = vrot.lane.b32.xlu0 %v883, 17
      %v888 = vpop.permute.xlu0 %887
      %v889 = vsel %vm201, %v886, %v888
      %v890 = vsel %vm201, %v888, %v886
      %v891 = vmul.f32 %v890, %v208
      %v892 = vmul.f32 %v889, %v212
      %893 = vst [vmem:[#allocation2 + $0x1c0] sm:$0xff] %v891
      %894 = vst [vmem:[#allocation2 + $0x1c8] sm:$0xff] %v892
      %895 = vrot.lane.b32.xlu0 %v881, 16
      %v896 = vpop.permute.xlu0 %895
      %897 = vrot.lane.b32.xlu0 %v883, 16
      %v898 = vpop.permute.xlu0 %897
      %v899 = vsel %vm223, %v896, %v898
      %v900 = vsel %vm223, %v898, %v896
      %v901 = vmul.f32 %v900, %v230
      %v902 = vmul.f32 %v899, %v234
      %903 = vst [vmem:[#allocation2 + $0x1d0] sm:$0xff] %v901
      %904 = vst [vmem:[#allocation2 + $0x1d8] sm:$0xff] %v902
      %905 = vrot.lane.b32.xlu0 %v881, 15
      %v906 = vpop.permute.xlu0 %905
      %907 = vrot.lane.b32.xlu0 %v883, 15
      %v908 = vpop.permute.xlu0 %907
      %v909 = vsel %vm245, %v906, %v908
      %v910 = vsel %vm245, %v908, %v906
      %v911 = vmul.f32 %v910, %v252
      %v912 = vmul.f32 %v909, %v256
      %913 = vst [vmem:[#allocation2 + $0x1e0] sm:$0xff] %v911
      %914 = vst [vmem:[#allocation2 + $0x1e8] sm:$0xff] %v912
      %915 = vrot.lane.b32.xlu0 %v881, 1
      %v916 = vpop.permute.xlu0 %915
      %917 = vrot.lane.b32.xlu0 %v883, 1
      %v918 = vpop.permute.xlu0 %917
      %v919 = vsel %vm267, %v916, %v918
      %v920 = vsel %vm267, %v918, %v916
      %v921 = vmul.f32 %v920, %v274
      %v922 = vmul.f32 %v919, %v278
      %923 = vst [vmem:[#allocation2 + $0x1f0] sm:$0xff] %v921
      %924 = vst [vmem:[#allocation2 + $0x1f8] sm:$0xff] %v922
      %925 = vst [vmem:[#allocation2 + $0x200] sm:$0xff] %v881
      %926 = vst [vmem:[#allocation2 + $0x208] sm:$0xff] %v883
      %927 = vrot.lane.b32.xlu0 %v881, 127
      %v928 = vpop.permute.xlu0 %927
      %929 = vrot.lane.b32.xlu0 %v883, 127
      %v930 = vpop.permute.xlu0 %929
      %v931 = vsel %vm291, %v928, %v930
      %v932 = vsel %vm291, %v930, %v928
      %v933 = vmul.f32 %v931, %v298
      %v934 = vmul.f32 %v932, %v302
      %935 = vst [vmem:[#allocation2 + $0x210] sm:$0xff] %v933
      %936 = vst [vmem:[#allocation2 + $0x218] sm:$0xff] %v934
      %937 = vrot.lane.b32.xlu0 %v881, 113
      %v938 = vpop.permute.xlu0 %937
      %939 = vrot.lane.b32.xlu0 %v883, 113
      %v940 = vpop.permute.xlu0 %939
      %v941 = vsel %vm313, %v938, %v940
      %v942 = vsel %vm313, %v940, %v938
      %v943 = vmul.f32 %v941, %v320
      %v944 = vmul.f32 %v942, %v324
      %945 = vst [vmem:[#allocation2 + $0x220] sm:$0xff] %v943
      %946 = vst [vmem:[#allocation2 + $0x228] sm:$0xff] %v944
      %947 = vrot.lane.b32.xlu0 %v881, 112
      %v948 = vpop.permute.xlu0 %947
      %949 = vrot.lane.b32.xlu0 %v883, 112
      %v950 = vpop.permute.xlu0 %949
      %v951 = vsel %vm335, %v948, %v950
      %v952 = vsel %vm335, %v950, %v948
      %v953 = vmul.f32 %v951, %v342
      %v954 = vmul.f32 %v952, %v346
      %955 = vst [vmem:[#allocation2 + $0x230] sm:$0xff] %v953
      %956 = vst [vmem:[#allocation2 + $0x238] sm:$0xff] %v954
      %957 = vrot.lane.b32.xlu0 %v881, 111
      %v958 = vpop.permute.xlu0 %957
      %959 = vrot.lane.b32.xlu0 %v883, 111
      %v960 = vpop.permute.xlu0 %959
      %v961 = vsel %vm357, %v958, %v960
      %v962 = vsel %vm357, %v960, %v958
      %v963 = vmul.f32 %v961, %v364
      %v964 = vmul.f32 %v962, %v368
      %965 = vst [vmem:[#allocation2 + $0x240] sm:$0xff] %v963
      %966 = vst [vmem:[#allocation2 + $0x248] sm:$0xff] %v964
      %s967 = scalar_lea.vmem %s1, 96
      %v968 = vld [vmem:[%s967] sm:$0xff]
      %v969 = vld [vmem:[%s967 + $0x8] sm:$0xff]
      %v970 = vld [vmem:[%s967 + $0x10] sm:$0xff]
      %v971 = vld [vmem:[#allocation2] sm:$0xff]
      %v972 = vld [vmem:[#allocation2 + $0x8] sm:$0xff]
      %v973 = vld [vmem:[#allocation2 + $0x10] sm:$0xff]
      %v974 = vld [vmem:[#allocation2 + $0x18] sm:$0xff]
      %v975 = vld [vmem:[#allocation2 + $0x20] sm:$0xff]
      %v976 = vld [vmem:[#allocation2 + $0x28] sm:$0xff]
      %v977 = vld [vmem:[#allocation2 + $0x30] sm:$0xff]
      %v978 = vld [vmem:[#allocation2 + $0x38] sm:$0xff]
      %v979 = vld [vmem:[#allocation2 + $0x40] sm:$0xff]
      %v980 = vld [vmem:[#allocation2 + $0x48] sm:$0xff]
      %v981 = vld [vmem:[#allocation2 + $0x50] sm:$0xff]
      %v982 = vld [vmem:[#allocation2 + $0x58] sm:$0xff]
      %v983 = vld [vmem:[#allocation2 + $0x60] sm:$0xff]
      %v984 = vld [vmem:[#allocation2 + $0x68] sm:$0xff]
      %v985 = vld [vmem:[#allocation2 + $0x70] sm:$0xff]
      %v986 = vld [vmem:[#allocation2 + $0x78] sm:$0xff]
      %v987 = vld [vmem:[#allocation2 + $0x80] sm:$0xff]
      %v988 = vld [vmem:[#allocation2 + $0x88] sm:$0xff]
      %v989 = vld [vmem:[#allocation2 + $0x90] sm:$0xff]
      %v990 = vld [vmem:[#allocation2 + $0x98] sm:$0xff]
      %v991 = vld [vmem:[#allocation2 + $0xa0] sm:$0xff]
      %v992 = vld [vmem:[#allocation2 + $0xa8] sm:$0xff]
      %v993 = vld [vmem:[#allocation2 + $0xb0] sm:$0xff]
      %v994 = vld [vmem:[#allocation2 + $0xb8] sm:$0xff]
      %v995 = vld [vmem:[#allocation2 + $0xc0] sm:$0xff]
      %v996 = vld [vmem:[#allocation2 + $0xc8] sm:$0xff]
      %v997 = vld [vmem:[#allocation2 + $0xd0] sm:$0xff]
      %v998 = vld [vmem:[#allocation2 + $0xd8] sm:$0xff]
      %v999 = vld [vmem:[#allocation2 + $0xe0] sm:$0xff]
      %v1000 = vld [vmem:[#allocation2 + $0xe8] sm:$0xff]
      %v1001 = vld [vmem:[#allocation2 + $0xf0] sm:$0xff]
      %v1002 = vld [vmem:[#allocation2 + $0xf8] sm:$0xff]
      %v1003 = vld [vmem:[#allocation2 + $0x100] sm:$0xff]
      %v1004 = vld [vmem:[#allocation2 + $0x108] sm:$0xff]
      %v1005 = vld [vmem:[#allocation2 + $0x110] sm:$0xff]
      %v1006 = vld [vmem:[#allocation2 + $0x118] sm:$0xff]
      %v1007 = vld [vmem:[#allocation2 + $0x120] sm:$0xff]
      %v1008 = vld [vmem:[#allocation2 + $0x128] sm:$0xff]
      %v1009 = vld [vmem:[#allocation2 + $0x130] sm:$0xff]
      %v1010 = vld [vmem:[#allocation2 + $0x138] sm:$0xff]
      %v1011 = vld [vmem:[#allocation2 + $0x140] sm:$0xff]
      %v1012 = vld [vmem:[#allocation2 + $0x148] sm:$0xff]
      %v1013 = vld [vmem:[#allocation2 + $0x150] sm:$0xff]
      %v1014 = vld [vmem:[#allocation2 + $0x158] sm:$0xff]
      %v1015 = vld [vmem:[#allocation2 + $0x160] sm:$0xff]
      %v1016 = vld [vmem:[#allocation2 + $0x168] sm:$0xff]
      %v1017 = vld [vmem:[#allocation2 + $0x170] sm:$0xff]
      %v1018 = vld [vmem:[#allocation2 + $0x178] sm:$0xff]
      %v1019 = vld [vmem:[#allocation2 + $0x180] sm:$0xff]
      %v1020 = vld [vmem:[#allocation2 + $0x188] sm:$0xff]
      %v1021 = vld [vmem:[#allocation2 + $0x190] sm:$0xff]
      %v1022 = vld [vmem:[#allocation2 + $0x198] sm:$0xff]
      %v1023 = vld [vmem:[#allocation2 + $0x1a0] sm:$0xff]
      %v1024 = vld [vmem:[#allocation2 + $0x1a8] sm:$0xff]
      %v1025 = vld [vmem:[#allocation2 + $0x1b0] sm:$0xff]
      %v1026 = vld [vmem:[#allocation2 + $0x1b8] sm:$0xff]
      %v1027 = vld [vmem:[#allocation2 + $0x1c0] sm:$0xff]
      %v1028 = vld [vmem:[#allocation2 + $0x1c8] sm:$0xff]
      %v1029 = vld [vmem:[#allocation2 + $0x1d0] sm:$0xff]
      %v1030 = vld [vmem:[#allocation2 + $0x1d8] sm:$0xff]
      %v1031 = vld [vmem:[#allocation2 + $0x1e0] sm:$0xff]
      %v1032 = vld [vmem:[#allocation2 + $0x1e8] sm:$0xff]
      %v1033 = vld [vmem:[#allocation2 + $0x1f0] sm:$0xff]
      %v1034 = vld [vmem:[#allocation2 + $0x1f8] sm:$0xff]
      %v1035 = vld [vmem:[#allocation2 + $0x200] sm:$0xff]
      %v1036 = vld [vmem:[#allocation2 + $0x208] sm:$0xff]
      %v1037 = vld [vmem:[#allocation2 + $0x210] sm:$0xff]
      %v1038 = vld [vmem:[#allocation2 + $0x218] sm:$0xff]
      %v1039 = vld [vmem:[#allocation2 + $0x220] sm:$0xff]
      %v1040 = vld [vmem:[#allocation2 + $0x228] sm:$0xff]
      %v1041 = vld [vmem:[#allocation2 + $0x230] sm:$0xff]
      %v1042 = vld [vmem:[#allocation2 + $0x238] sm:$0xff]
      %v1043 = vld [vmem:[#allocation2 + $0x240] sm:$0xff]
      %v1044 = vld [vmem:[#allocation2 + $0x248] sm:$0xff]
      %vm1045 = vcmask 326656
      %v1047 = vsel %vm1045, %v970, 0
      %1049 = vmatprep.subr.mxu0 %v972
      %1050 = vmatpush1.msra.mxu0 %v971
      %1051 = vmatprep.subr.mxu0 %v974
      %1052 = vmatpush1.msra.mxu0 %v973
      %1053 = vmatprep.subr.mxu0 %v976
      %1054 = vmatpush1.msra.mxu0 %v975
      %1055 = vmatprep.subr.mxu0 %v978
      %1056 = vmatpush1.msra.mxu0 %v977
      %1057 = vmatprep.subr.mxu0 %v980
      %1058 = vmatpush1.msra.mxu0 %v979
      %1059 = vmatprep.subr.mxu0 %v982
      %1060 = vmatpush1.msra.mxu0 %v981
      %1061 = vmatprep.subr.mxu0 %v984
      %1062 = vmatpush1.msra.mxu0 %v983
      %1063 = vmatprep.subr.mxu0 %v986
      %1064 = vmatpush1.msra.mxu0 %v985
      %1065 = vmatprep.subr.mxu0 %v988
      %1066 = vmatpush1.msra.mxu0 %v987
      %1067 = vmatprep.subr.mxu0 %v990
      %1068 = vmatpush1.msra.mxu0 %v989
      %1069 = vmatprep.subr.mxu0 %v992
      %1070 = vmatpush1.msra.mxu0 %v991
      %1071 = vmatprep.subr.mxu0 %v994
      %1072 = vmatpush1.msra.mxu0 %v993
      %1073 = vmatprep.subr.mxu0 %v996
      %1074 = vmatpush1.msra.mxu0 %v995
      %1075 = vmatprep.subr.mxu0 %v998
      %1076 = vmatpush1.msra.mxu0 %v997
      %1077 = vmatprep.subr.mxu0 %v1000
      %1078 = vmatpush1.msra.mxu0 %v999
      %1079 = vmatprep.subr.mxu0 %v1002
      %1080 = vmatpush1.msra.mxu0 %v1001
      %1081 = vmatprep.subr.mxu0 %v1004
      %1082 = vmatpush1.msra.mxu0 %v1003
      %1083 = vmatprep.subr.mxu0 %v1006
      %1084 = vmatpush1.msra.mxu0 %v1005
      %1085 = vmatprep.subr.mxu0 %v1008
      %1086 = vmatpush1.msra.mxu0 %v1007
      %1087 = vmatprep.subr.mxu0 %v1010
      %1088 = vmatpush1.msra.mxu0 %v1009
      %1089 = vmatprep.subr.mxu0 %v1012
      %1090 = vmatpush1.msra.mxu0 %v1011
      %1091 = vmatprep.subr.mxu0 %v1014
      %1092 = vmatpush1.msra.mxu0 %v1013
      %1093 = vmatprep.subr.mxu0 %v1016
      %1094 = vmatpush1.msra.mxu0 %v1015
      %1095 = vmatprep.subr.mxu0 %v1018
      %1096 = vmatpush1.msra.mxu0 %v1017
      %1097 = vmatprep.subr.mxu0 %v1020
      %1098 = vmatpush1.msra.mxu0 %v1019
      %1099 = vmatprep.subr.mxu0 %v1022
      %1100 = vmatpush1.msra.mxu0 %v1021
      %1101 = vmatprep.subr.mxu0 %v1024
      %1102 = vmatpush1.msra.mxu0 %v1023
      %1103 = vmatprep.subr.mxu0 %v1026
      %1104 = vmatpush1.msra.mxu0 %v1025
      %1105 = vmatprep.subr.mxu0 %v1028
      %1106 = vmatpush1.msra.mxu0 %v1027
      %1107 = vmatprep.subr.mxu0 %v1030
      %1108 = vmatpush1.msra.mxu0 %v1029
      %1109 = vmatprep.subr.mxu0 %v1032
      %1110 = vmatpush1.msra.mxu0 %v1031
      %1111 = vmatprep.subr.mxu0 %v1034
      %1112 = vmatpush1.msra.mxu0 %v1033
      %1113 = vmatprep.mubr.f32.mxu0 %v969
      %1114 = vmatmul.mubr.f32.gmra.mrb[0].mxu0 %v968
      %v1115 = vpop.f32.mrb[0].mxu0
      %v1116 = vadd.f32 0.0, %v1115
      %v1117 = vpop.f32.mrb[0].mxu0
      %v1118 = vadd.f32 0.0, %v1117
      %1119 = vdwg.mxu0
      %1120 = vmatprep.subr.mxu0 %v1036
      %1121 = vmatpush1.msra.mxu0 %v1035
      %1122 = vmatprep.subr.mxu0 %v1038
      %1123 = vmatpush1.msra.mxu0 %v1037
      %1124 = vmatprep.subr.mxu0 %v1040
      %1125 = vmatpush1.msra.mxu0 %v1039
      %1126 = vmatprep.subr.mxu0 %v1042
      %1127 = vmatpush1.msra.mxu0 %v1041
      %1128 = vmatprep.subr.mxu0 %v1044
      %1129 = vmatpush1.msra.mxu0 %v1043
      %1130 = vmatprep.subr.mxu0 0.0
      %1131 = vmatpush1.msra.mxu0 0.0
      %1132 = vmatprep.subr.mxu0 0.0
      %1133 = vmatpush1.msra.mxu0 0.0
      %1134 = vmatprep.subr.mxu0 0.0
      %1135 = vmatpush1.msra.mxu0 0.0
      %1136 = vmatprep.subr.mxu0 0.0
      %1137 = vmatpush1.msra.mxu0 0.0
      %1138 = vmatprep.subr.mxu0 0.0
      %1139 = vmatpush1.msra.mxu0 0.0
      %1140 = vmatprep.subr.mxu0 0.0
      %1141 = vmatpush1.msra.mxu0 0.0
      %1142 = vmatprep.subr.mxu0 0.0
      %1143 = vmatpush1.msra.mxu0 0.0
      %1144 = vmatprep.subr.mxu0 0.0
      %1145 = vmatpush1.msra.mxu0 0.0
      %1146 = vmatprep.subr.mxu0 0.0
      %1147 = vmatpush1.msra.mxu0 0.0
      %1148 = vmatprep.subr.mxu0 0.0
      %1149 = vmatpush1.msra.mxu0 0.0
      %1150 = vmatprep.subr.mxu0 0.0
      %1151 = vmatpush1.msra.mxu0 0.0
      %1152 = vmatprep.subr.mxu0 0.0
      %1153 = vmatpush1.msra.mxu0 0.0
      %1154 = vmatprep.subr.mxu0 0.0
      %1155 = vmatpush1.msra.mxu0 0.0
      %1156 = vmatprep.subr.mxu0 0.0
      %1157 = vmatpush1.msra.mxu0 0.0
      %1158 = vmatprep.subr.mxu0 0.0
      %1159 = vmatpush1.msra.mxu0 0.0
      %1160 = vmatprep.subr.mxu0 0.0
      %1161 = vmatpush1.msra.mxu0 0.0
      %1162 = vmatprep.subr.mxu0 0.0
      %1163 = vmatpush1.msra.mxu0 0.0
      %1164 = vmatprep.subr.mxu0 0.0
      %1165 = vmatpush1.msra.mxu0 0.0
      %1166 = vmatprep.subr.mxu0 0.0
      %1167 = vmatpush1.msra.mxu0 0.0
      %1168 = vmatprep.subr.mxu0 0.0
      %1169 = vmatpush1.msra.mxu0 0.0
      %1170 = vmatprep.subr.mxu0 0.0
      %1171 = vmatpush1.msra.mxu0 0.0
      %1172 = vmatprep.subr.mxu0 0.0
      %1173 = vmatpush1.msra.mxu0 0.0
      %1174 = vmatprep.subr.mxu0 0.0
      %1175 = vmatpush1.msra.mxu0 0.0
      %1176 = vmatprep.subr.mxu0 0.0
      %1177 = vmatpush1.msra.mxu0 0.0
      %1178 = vmatprep.subr.mxu0 0.0
      %1179 = vmatpush1.msra.mxu0 0.0
      %1180 = vmatprep.subr.mxu0 0.0
      %1181 = vmatpush1.msra.mxu0 0.0
      %1182 = vmatprep.subr.mxu0 0.0
      %1183 = vmatpush1.msra.mxu0 0.0
      %1184 = vmatprep.mubr.f32.mxu0 0.0
      %1185 = vmatmul.mubr.f32.gmra.mrb[0].mxu0 %v1047
      %v1186 = vpop.f32.mrb[0].mxu0
      %v1187 = vadd.f32 %v1116, %v1186
      %v1188 = vpop.f32.mrb[0].mxu0
      %v1189 = vadd.f32 %v1118, %v1188
      %1190 = vdwg.mxu0
      %1191 = vrot.lane.b32.xlu0 %v1187, 17
      %v1192 = vpop.permute.xlu0 %1191
      %1193 = vrot.lane.b32.xlu0 %v1189, 17
      %v1194 = vpop.permute.xlu0 %1193
      %v1195 = vsel %vm201, %v1192, %v1194
      %v1196 = vsel %vm201, %v1194, %v1192
      %v1197 = vmul.f32 %v1196, %v208
      %v1198 = vmul.f32 %v1195, %v212
      %1199 = vst [vmem:[#allocation2 + $0x250] sm:$0xff] %v1197
      %1200 = vst [vmem:[#allocation2 + $0x258] sm:$0xff] %v1198
      %1201 = vrot.lane.b32.xlu0 %v1187, 16
      %v1202 = vpop.permute.xlu0 %1201
      %1203 = vrot.lane.b32.xlu0 %v1189, 16
      %v1204 = vpop.permute.xlu0 %1203
      %v1205 = vsel %vm223, %v1202, %v1204
      %v1206 = vsel %vm223, %v1204, %v1202
      %v1207 = vmul.f32 %v1206, %v230
      %v1208 = vmul.f32 %v1205, %v234
      %1209 = vst [vmem:[#allocation2 + $0x260] sm:$0xff] %v1207
      %1210 = vst [vmem:[#allocation2 + $0x268] sm:$0xff] %v1208
      %1211 = vrot.lane.b32.xlu0 %v1187, 15
      %v1212 = vpop.permute.xlu0 %1211
      %1213 = vrot.lane.b32.xlu0 %v1189, 15
      %v1214 = vpop.permute.xlu0 %1213
      %v1215 = vsel %vm245, %v1212, %v1214
      %v1216 = vsel %vm245, %v1214, %v1212
      %v1217 = vmul.f32 %v1216, %v252
      %v1218 = vmul.f32 %v1215, %v256
      %1219 = vst [vmem:[#allocation2 + $0x270] sm:$0xff] %v1217
      %1220 = vst [vmem:[#allocation2 + $0x278] sm:$0xff] %v1218
      %1221 = vrot.lane.b32.xlu0 %v1187, 1
      %v1222 = vpop.permute.xlu0 %1221
      %1223 = vrot.lane.b32.xlu0 %v1189, 1
      %v1224 = vpop.permute.xlu0 %1223
      %v1225 = vsel %vm267, %v1222, %v1224
      %v1226 = vsel %vm267, %v1224, %v1222
      %v1227 = vmul.f32 %v1226, %v274
      %v1228 = vmul.f32 %v1225, %v278
      %1229 = vst [vmem:[#allocation2 + $0x280] sm:$0xff] %v1227
      %1230 = vst [vmem:[#allocation2 + $0x288] sm:$0xff] %v1228
      %1231 = vst [vmem:[#allocation2 + $0x290] sm:$0xff] %v1187
      %1232 = vst [vmem:[#allocation2 + $0x298] sm:$0xff] %v1189
      %1233 = vrot.lane.b32.xlu0 %v1187, 127
      %v1234 = vpop.permute.xlu0 %1233
      %1235 = vrot.lane.b32.xlu0 %v1189, 127
      %v1236 = vpop.permute.xlu0 %1235
      %v1237 = vsel %vm291, %v1234, %v1236
      %v1238 = vsel %vm291, %v1236, %v1234
      %v1239 = vmul.f32 %v1237, %v298
      %v1240 = vmul.f32 %v1238, %v302
      %1241 = vst [vmem:[#allocation2 + $0x2a0] sm:$0xff] %v1239
      %1242 = vst [vmem:[#allocation2 + $0x2a8] sm:$0xff] %v1240
      %1243 = vrot.lane.b32.xlu0 %v1187, 113
      %v1244 = vpop.permute.xlu0 %1243
      %1245 = vrot.lane.b32.xlu0 %v1189, 113
      %v1246 = vpop.permute.xlu0 %1245
      %v1247 = vsel %vm313, %v1244, %v1246
      %v1248 = vsel %vm313, %v1246, %v1244
      %v1249 = vmul.f32 %v1247, %v320
      %v1250 = vmul.f32 %v1248, %v324
      %1251 = vst [vmem:[#allocation2 + $0x2b0] sm:$0xff] %v1249
      %1252 = vst [vmem:[#allocation2 + $0x2b8] sm:$0xff] %v1250
      %1253 = vrot.lane.b32.xlu0 %v1187, 112
      %v1254 = vpop.permute.xlu0 %1253
      %1255 = vrot.lane.b32.xlu0 %v1189, 112
      %v1256 = vpop.permute.xlu0 %1255
      %v1257 = vsel %vm335, %v1254, %v1256
      %v1258 = vsel %vm335, %v1256, %v1254
      %v1259 = vmul.f32 %v1257, %v342
      %v1260 = vmul.f32 %v1258, %v346
      %1261 = vst [vmem:[#allocation2 + $0x2c0] sm:$0xff] %v1259
      %1262 = vst [vmem:[#allocation2 + $0x2c8] sm:$0xff] %v1260
      %1263 = vrot.lane.b32.xlu0 %v1187, 111
      %v1264 = vpop.permute.xlu0 %1263
      %1265 = vrot.lane.b32.xlu0 %v1189, 111
      %v1266 = vpop.permute.xlu0 %1265
      %v1267 = vsel %vm357, %v1264, %v1266
      %v1268 = vsel %vm357, %v1266, %v1264
      %v1269 = vmul.f32 %v1267, %v364
      %v1270 = vmul.f32 %v1268, %v368
      %1271 = vst [vmem:[#allocation2 + $0x2d0] sm:$0xff] %v1269
      %1272 = vst [vmem:[#allocation2 + $0x2d8] sm:$0xff] %v1270
      %s1273 = scalar_lea.vmem %s1, 128
      %v1274 = vld [vmem:[%s1273] sm:$0xff]
      %v1275 = vld [vmem:[%s1273 + $0x8] sm:$0xff]
      %v1276 = vld [vmem:[%s1273 + $0x10] sm:$0xff]
      %v1277 = vld [vmem:[#allocation2] sm:$0xff]
      %v1278 = vld [vmem:[#allocation2 + $0x8] sm:$0xff]
      %v1279 = vld [vmem:[#allocation2 + $0x10] sm:$0xff]
      %v1280 = vld [vmem:[#allocation2 + $0x18] sm:$0xff]
      %v1281 = vld [vmem:[#allocation2 + $0x20] sm:$0xff]
      %v1282 = vld [vmem:[#allocation2 + $0x28] sm:$0xff]
      %v1283 = vld [vmem:[#allocation2 + $0x30] sm:$0xff]
      %v1284 = vld [vmem:[#allocation2 + $0x38] sm:$0xff]
      %v1285 = vld [vmem:[#allocation2 + $0x40] sm:$0xff]
      %v1286 = vld [vmem:[#allocation2 + $0x48] sm:$0xff]
      %v1287 = vld [vmem:[#allocation2 + $0x50] sm:$0xff]
      %v1288 = vld [vmem:[#allocation2 + $0x58] sm:$0xff]
      %v1289 = vld [vmem:[#allocation2 + $0x60] sm:$0xff]
      %v1290 = vld [vmem:[#allocation2 + $0x68] sm:$0xff]
      %v1291 = vld [vmem:[#allocation2 + $0x70] sm:$0xff]
      %v1292 = vld [vmem:[#allocation2 + $0x78] sm:$0xff]
      %v1293 = vld [vmem:[#allocation2 + $0x80] sm:$0xff]
      %v1294 = vld [vmem:[#allocation2 + $0x88] sm:$0xff]
      %v1295 = vld [vmem:[#allocation2 + $0x90] sm:$0xff]
      %v1296 = vld [vmem:[#allocation2 + $0x98] sm:$0xff]
      %v1297 = vld [vmem:[#allocation2 + $0xa0] sm:$0xff]
      %v1298 = vld [vmem:[#allocation2 + $0xa8] sm:$0xff]
      %v1299 = vld [vmem:[#allocation2 + $0xb0] sm:$0xff]
      %v1300 = vld [vmem:[#allocation2 + $0xb8] sm:$0xff]
      %v1301 = vld [vmem:[#allocation2 + $0xc0] sm:$0xff]
      %v1302 = vld [vmem:[#allocation2 + $0xc8] sm:$0xff]
      %v1303 = vld [vmem:[#allocation2 + $0xd0] sm:$0xff]
      %v1304 = vld [vmem:[#allocation2 + $0xd8] sm:$0xff]
      %v1305 = vld [vmem:[#allocation2 + $0xe0] sm:$0xff]
      %v1306 = vld [vmem:[#allocation2 + $0xe8] sm:$0xff]
      %v1307 = vld [vmem:[#allocation2 + $0xf0] sm:$0xff]
      %v1308 = vld [vmem:[#allocation2 + $0xf8] sm:$0xff]
      %v1309 = vld [vmem:[#allocation2 + $0x100] sm:$0xff]
      %v1310 = vld [vmem:[#allocation2 + $0x108] sm:$0xff]
      %v1311 = vld [vmem:[#allocation2 + $0x110] sm:$0xff]
      %v1312 = vld [vmem:[#allocation2 + $0x118] sm:$0xff]
      %v1313 = vld [vmem:[#allocation2 + $0x120] sm:$0xff]
      %v1314 = vld [vmem:[#allocation2 + $0x128] sm:$0xff]
      %v1315 = vld [vmem:[#allocation2 + $0x130] sm:$0xff]
      %v1316 = vld [vmem:[#allocation2 + $0x138] sm:$0xff]
      %v1317 = vld [vmem:[#allocation2 + $0x140] sm:$0xff]
      %v1318 = vld [vmem:[#allocation2 + $0x148] sm:$0xff]
      %v1319 = vld [vmem:[#allocation2 + $0x150] sm:$0xff]
      %v1320 = vld [vmem:[#allocation2 + $0x158] sm:$0xff]
      %v1321 = vld [vmem:[#allocation2 + $0x160] sm:$0xff]
      %v1322 = vld [vmem:[#allocation2 + $0x168] sm:$0xff]
      %v1323 = vld [vmem:[#allocation2 + $0x170] sm:$0xff]
      %v1324 = vld [vmem:[#allocation2 + $0x178] sm:$0xff]
      %v1325 = vld [vmem:[#allocation2 + $0x180] sm:$0xff]
      %v1326 = vld [vmem:[#allocation2 + $0x188] sm:$0xff]
      %v1327 = vld [vmem:[#allocation2 + $0x190] sm:$0xff]
      %v1328 = vld [vmem:[#allocation2 + $0x198] sm:$0xff]
      %v1329 = vld [vmem:[#allocation2 + $0x1a0] sm:$0xff]
      %v1330 = vld [vmem:[#allocation2 + $0x1a8] sm:$0xff]
      %v1331 = vld [vmem:[#allocation2 + $0x1b0] sm:$0xff]
      %v1332 = vld [vmem:[#allocation2 + $0x1b8] sm:$0xff]
      %v1333 = vld [vmem:[#allocation2 + $0x1c0] sm:$0xff]
      %v1334 = vld [vmem:[#allocation2 + $0x1c8] sm:$0xff]
      %v1335 = vld [vmem:[#allocation2 + $0x1d0] sm:$0xff]
      %v1336 = vld [vmem:[#allocation2 + $0x1d8] sm:$0xff]
      %v1337 = vld [vmem:[#allocation2 + $0x1e0] sm:$0xff]
      %v1338 = vld [vmem:[#allocation2 + $0x1e8] sm:$0xff]
      %v1339 = vld [vmem:[#allocation2 + $0x1f0] sm:$0xff]
      %v1340 = vld [vmem:[#allocation2 + $0x1f8] sm:$0xff]
      %v1341 = vld [vmem:[#allocation2 + $0x200] sm:$0xff]
      %v1342 = vld [vmem:[#allocation2 + $0x208] sm:$0xff]
      %v1343 = vld [vmem:[#allocation2 + $0x210] sm:$0xff]
      %v1344 = vld [vmem:[#allocation2 + $0x218] sm:$0xff]
      %v1345 = vld [vmem:[#allocation2 + $0x220] sm:$0xff]
      %v1346 = vld [vmem:[#allocation2 + $0x228] sm:$0xff]
      %v1347 = vld [vmem:[#allocation2 + $0x230] sm:$0xff]
      %v1348 = vld [vmem:[#allocation2 + $0x238] sm:$0xff]
      %v1349 = vld [vmem:[#allocation2 + $0x240] sm:$0xff]
      %v1350 = vld [vmem:[#allocation2 + $0x248] sm:$0xff]
      %v1351 = vld [vmem:[#allocation2 + $0x250] sm:$0xff]
      %v1352 = vld [vmem:[#allocation2 + $0x258] sm:$0xff]
      %v1353 = vld [vmem:[#allocation2 + $0x260] sm:$0xff]
      %v1354 = vld [vmem:[#allocation2 + $0x268] sm:$0xff]
      %v1355 = vld [vmem:[#allocation2 + $0x270] sm:$0xff]
      %v1356 = vld [vmem:[#allocation2 + $0x278] sm:$0xff]
      %v1357 = vld [vmem:[#allocation2 + $0x280] sm:$0xff]
      %v1358 = vld [vmem:[#allocation2 + $0x288] sm:$0xff]
      %v1359 = vld [vmem:[#allocation2 + $0x290] sm:$0xff]
      %v1360 = vld [vmem:[#allocation2 + $0x298] sm:$0xff]
      %v1361 = vld [vmem:[#allocation2 + $0x2a0] sm:$0xff]
      %v1362 = vld [vmem:[#allocation2 + $0x2a8] sm:$0xff]
      %v1363 = vld [vmem:[#allocation2 + $0x2b0] sm:$0xff]
      %v1364 = vld [vmem:[#allocation2 + $0x2b8] sm:$0xff]
      %v1365 = vld [vmem:[#allocation2 + $0x2c0] sm:$0xff]
      %v1366 = vld [vmem:[#allocation2 + $0x2c8] sm:$0xff]
      %v1367 = vld [vmem:[#allocation2 + $0x2d0] sm:$0xff]
      %v1368 = vld [vmem:[#allocation2 + $0x2d8] sm:$0xff]
      %vm1369 = vcmask 916480
      %v1371 = vsel %vm1369, %v1276, 0
      %1373 = vmatprep.subr.mxu0 %v1278
      %1374 = vmatpush1.msra.mxu0 %v1277
      %1375 = vmatprep.subr.mxu0 %v1280
      %1376 = vmatpush1.msra.mxu0 %v1279
      %1377 = vmatprep.subr.mxu0 %v1282
      %1378 = vmatpush1.msra.mxu0 %v1281
      %1379 = vmatprep.subr.mxu0 %v1284
      %1380 = vmatpush1.msra.mxu0 %v1283
      %1381 = vmatprep.subr.mxu0 %v1286
      %1382 = vmatpush1.msra.mxu0 %v1285
      %1383 = vmatprep.subr.mxu0 %v1288
      %1384 = vmatpush1.msra.mxu0 %v1287
      %1385 = vmatprep.subr.mxu0 %v1290
      %1386 = vmatpush1.msra.mxu0 %v1289
      %1387 = vmatprep.subr.mxu0 %v1292
      %1388 = vmatpush1.msra.mxu0 %v1291
      %1389 = vmatprep.subr.mxu0 %v1294
      %1390 = vmatpush1.msra.mxu0 %v1293
      %1391 = vmatprep.subr.mxu0 %v1296
      %1392 = vmatpush1.msra.mxu0 %v1295
      %1393 = vmatprep.subr.mxu0 %v1298
      %1394 = vmatpush1.msra.mxu0 %v1297
      %1395 = vmatprep.subr.mxu0 %v1300
      %1396 = vmatpush1.msra.mxu0 %v1299
      %1397 = vmatprep.subr.mxu0 %v1302
      %1398 = vmatpush1.msra.mxu0 %v1301
      %1399 = vmatprep.subr.mxu0 %v1304
      %1400 = vmatpush1.msra.mxu0 %v1303
      %1401 = vmatprep.subr.mxu0 %v1306
      %1402 = vmatpush1.msra.mxu0 %v1305
      %1403 = vmatprep.subr.mxu0 %v1308
      %1404 = vmatpush1.msra.mxu0 %v1307
      %1405 = vmatprep.subr.mxu0 %v1310
      %1406 = vmatpush1.msra.mxu0 %v1309
      %1407 = vmatprep.subr.mxu0 %v1312
      %1408 = vmatpush1.msra.mxu0 %v1311
      %1409 = vmatprep.subr.mxu0 %v1314
      %1410 = vmatpush1.msra.mxu0 %v1313
      %1411 = vmatprep.subr.mxu0 %v1316
      %1412 = vmatpush1.msra.mxu0 %v1315
      %1413 = vmatprep.subr.mxu0 %v1318
      %1414 = vmatpush1.msra.mxu0 %v1317
      %1415 = vmatprep.subr.mxu0 %v1320
      %1416 = vmatpush1.msra.mxu0 %v1319
      %1417 = vmatprep.subr.mxu0 %v1322
      %1418 = vmatpush1.msra.mxu0 %v1321
      %1419 = vmatprep.subr.mxu0 %v1324
      %1420 = vmatpush1.msra.mxu0 %v1323
      %1421 = vmatprep.subr.mxu0 %v1326
      %1422 = vmatpush1.msra.mxu0 %v1325
      %1423 = vmatprep.subr.mxu0 %v1328
      %1424 = vmatpush1.msra.mxu0 %v1327
      %1425 = vmatprep.subr.mxu0 %v1330
      %1426 = vmatpush1.msra.mxu0 %v1329
      %1427 = vmatprep.subr.mxu0 %v1332
      %1428 = vmatpush1.msra.mxu0 %v1331
      %1429 = vmatprep.subr.mxu0 %v1334
      %1430 = vmatpush1.msra.mxu0 %v1333
      %1431 = vmatprep.subr.mxu0 %v1336
      %1432 = vmatpush1.msra.mxu0 %v1335
      %1433 = vmatprep.subr.mxu0 %v1338
      %1434 = vmatpush1.msra.mxu0 %v1337
      %1435 = vmatprep.subr.mxu0 %v1340
      %1436 = vmatpush1.msra.mxu0 %v1339
      %1437 = vmatprep.mubr.f32.mxu0 %v1275
      %1438 = vmatmul.mubr.f32.gmra.mrb[0].mxu0 %v1274
      %v1439 = vpop.f32.mrb[0].mxu0
      %v1440 = vadd.f32 0.0, %v1439
      %v1441 = vpop.f32.mrb[0].mxu0
      %v1442 = vadd.f32 0.0, %v1441
      %1443 = vdwg.mxu0
      %1444 = vmatprep.subr.mxu0 %v1342
      %1445 = vmatpush1.msra.mxu0 %v1341
      %1446 = vmatprep.subr.mxu0 %v1344
      %1447 = vmatpush1.msra.mxu0 %v1343
      %1448 = vmatprep.subr.mxu0 %v1346
      %1449 = vmatpush1.msra.mxu0 %v1345
      %1450 = vmatprep.subr.mxu0 %v1348
      %1451 = vmatpush1.msra.mxu0 %v1347
      %1452 = vmatprep.subr.mxu0 %v1350
      %1453 = vmatpush1.msra.mxu0 %v1349
      %1454 = vmatprep.subr.mxu0 %v1352
      %1455 = vmatpush1.msra.mxu0 %v1351
      %1456 = vmatprep.subr.mxu0 %v1354
      %1457 = vmatpush1.msra.mxu0 %v1353
      %1458 = vmatprep.subr.mxu0 %v1356
      %1459 = vmatpush1.msra.mxu0 %v1355
      %1460 = vmatprep.subr.mxu0 %v1358
      %1461 = vmatpush1.msra.mxu0 %v1357
      %1462 = vmatprep.subr.mxu0 %v1360
      %1463 = vmatpush1.msra.mxu0 %v1359
      %1464 = vmatprep.subr.mxu0 %v1362
      %1465 = vmatpush1.msra.mxu0 %v1361
      %1466 = vmatprep.subr.mxu0 %v1364
      %1467 = vmatpush1.msra.mxu0 %v1363
      %1468 = vmatprep.subr.mxu0 %v1366
      %1469 = vmatpush1.msra.mxu0 %v1365
      %1470 = vmatprep.subr.mxu0 %v1368
      %1471 = vmatpush1.msra.mxu0 %v1367
      %1472 = vmatprep.subr.mxu0 0.0
      %1473 = vmatpush1.msra.mxu0 0.0
      %1474 = vmatprep.subr.mxu0 0.0
      %1475 = vmatpush1.msra.mxu0 0.0
      %1476 = vmatprep.subr.mxu0 0.0
      %1477 = vmatpush1.msra.mxu0 0.0
      %1478 = vmatprep.subr.mxu0 0.0
      %1479 = vmatpush1.msra.mxu0 0.0
      %1480 = vmatprep.subr.mxu0 0.0
      %1481 = vmatpush1.msra.mxu0 0.0
      %1482 = vmatprep.subr.mxu0 0.0
      %1483 = vmatpush1.msra.mxu0 0.0
      %1484 = vmatprep.subr.mxu0 0.0
      %1485 = vmatpush1.msra.mxu0 0.0
      %1486 = vmatprep.subr.mxu0 0.0
      %1487 = vmatpush1.msra.mxu0 0.0
      %1488 = vmatprep.subr.mxu0 0.0
      %1489 = vmatpush1.msra.mxu0 0.0
      %1490 = vmatprep.subr.mxu0 0.0
      %1491 = vmatpush1.msra.mxu0 0.0
      %1492 = vmatprep.subr.mxu0 0.0
      %1493 = vmatpush1.msra.mxu0 0.0
      %1494 = vmatprep.subr.mxu0 0.0
      %1495 = vmatpush1.msra.mxu0 0.0
      %1496 = vmatprep.subr.mxu0 0.0
      %1497 = vmatpush1.msra.mxu0 0.0
      %1498 = vmatprep.subr.mxu0 0.0
      %1499 = vmatpush1.msra.mxu0 0.0
      %1500 = vmatprep.subr.mxu0 0.0
      %1501 = vmatpush1.msra.mxu0 0.0
      %1502 = vmatprep.subr.mxu0 0.0
      %1503 = vmatpush1.msra.mxu0 0.0
      %1504 = vmatprep.subr.mxu0 0.0
      %1505 = vmatpush1.msra.mxu0 0.0
      %1506 = vmatprep.subr.mxu0 0.0
      %1507 = vmatpush1.msra.mxu0 0.0
      %1508 = vmatprep.mubr.f32.mxu0 0.0
      %1509 = vmatmul.mubr.f32.gmra.mrb[0].mxu0 %v1371
      %v1510 = vpop.f32.mrb[0].mxu0
      %v1511 = vadd.f32 %v1440, %v1510
      %v1512 = vpop.f32.mrb[0].mxu0
      %v1513 = vadd.f32 %v1442, %v1512
      %1514 = vdwg.mxu0
      %1515 = vrot.lane.b32.xlu0 %v1511, 17
      %v1516 = vpop.permute.xlu0 %1515
      %1517 = vrot.lane.b32.xlu0 %v1513, 17
      %v1518 = vpop.permute.xlu0 %1517
      %v1519 = vsel %vm201, %v1516, %v1518
      %v1520 = vsel %vm201, %v1518, %v1516
      %v1521 = vmul.f32 %v1520, %v208
      %v1522 = vmul.f32 %v1519, %v212
      %1523 = vst [vmem:[#allocation2 + $0x2e0] sm:$0xff] %v1521
      %1524 = vst [vmem:[#allocation2 + $0x2e8] sm:$0xff] %v1522
      %1525 = vrot.lane.b32.xlu0 %v1511, 16
      %v1526 = vpop.permute.xlu0 %1525
      %1527 = vrot.lane.b32.xlu0 %v1513, 16
      %v1528 = vpop.permute.xlu0 %1527
      %v1529 = vsel %vm223, %v1526, %v1528
      %v1530 = vsel %vm223, %v1528, %v1526
      %v1531 = vmul.f32 %v1530, %v230
      %v1532 = vmul.f32 %v1529, %v234
      %1533 = vst [vmem:[#allocation2 + $0x2f0] sm:$0xff] %v1531
      %1534 = vst [vmem:[#allocation2 + $0x2f8] sm:$0xff] %v1532
      %1535 = vrot.lane.b32.xlu0 %v1511, 15
      %v1536 = vpop.permute.xlu0 %1535
      %1537 = vrot.lane.b32.xlu0 %v1513, 15
      %v1538 = vpop.permute.xlu0 %1537
      %v1539 = vsel %vm245, %v1536, %v1538
      %v1540 = vsel %vm245, %v1538, %v1536
      %v1541 = vmul.f32 %v1540, %v252
      %v1542 = vmul.f32 %v1539, %v256
      %1543 = vst [vmem:[#allocation2 + $0x300] sm:$0xff] %v1541
      %1544 = vst [vmem:[#allocation2 + $0x308] sm:$0xff] %v1542
      %1545 = vrot.lane.b32.xlu0 %v1511, 1
      %v1546 = vpop.permute.xlu0 %1545
      %1547 = vrot.lane.b32.xlu0 %v1513, 1
      %v1548 = vpop.permute.xlu0 %1547
      %v1549 = vsel %vm267, %v1546, %v1548
      %v1550 = vsel %vm267, %v1548, %v1546
      %v1551 = vmul.f32 %v1550, %v274
      %v1552 = vmul.f32 %v1549, %v278
      %1553 = vst [vmem:[#allocation2 + $0x310] sm:$0xff] %v1551
      %1554 = vst [vmem:[#allocation2 + $0x318] sm:$0xff] %v1552
      %1555 = vst [vmem:[#allocation2 + $0x320] sm:$0xff] %v1511
      %1556 = vst [vmem:[#allocation2 + $0x328] sm:$0xff] %v1513
      %1557 = vrot.lane.b32.xlu0 %v1511, 127
      %v1558 = vpop.permute.xlu0 %1557
      %1559 = vrot.lane.b32.xlu0 %v1513, 127
      %v1560 = vpop.permute.xlu0 %1559
      %v1561 = vsel %vm291, %v1558, %v1560
      %v1562 = vsel %vm291, %v1560, %v1558
      %v1563 = vmul.f32 %v1561, %v298
      %v1564 = vmul.f32 %v1562, %v302
      %1565 = vst [vmem:[#allocation2 + $0x330] sm:$0xff] %v1563
      %1566 = vst [vmem:[#allocation2 + $0x338] sm:$0xff] %v1564
      %1567 = vrot.lane.b32.xlu0 %v1511, 113
      %v1568 = vpop.permute.xlu0 %1567
      %1569 = vrot.lane.b32.xlu0 %v1513, 113
      %v1570 = vpop.permute.xlu0 %1569
      %v1571 = vsel %vm313, %v1568, %v1570
      %v1572 = vsel %vm313, %v1570, %v1568
      %v1573 = vmul.f32 %v1571, %v320
      %v1574 = vmul.f32 %v1572, %v324
      %1575 = vst [vmem:[#allocation2 + $0x340] sm:$0xff] %v1573
      %1576 = vst [vmem:[#allocation2 + $0x348] sm:$0xff] %v1574
      %1577 = vrot.lane.b32.xlu0 %v1511, 112
      %v1578 = vpop.permute.xlu0 %1577
      %1579 = vrot.lane.b32.xlu0 %v1513, 112
      %v1580 = vpop.permute.xlu0 %1579
      %v1581 = vsel %vm335, %v1578, %v1580
      %v1582 = vsel %vm335, %v1580, %v1578
      %v1583 = vmul.f32 %v1581, %v342
      %v1584 = vmul.f32 %v1582, %v346
      %1585 = vst [vmem:[#allocation2 + $0x350] sm:$0xff] %v1583
      %1586 = vst [vmem:[#allocation2 + $0x358] sm:$0xff] %v1584
      %1587 = vrot.lane.b32.xlu0 %v1511, 111
      %v1588 = vpop.permute.xlu0 %1587
      %1589 = vrot.lane.b32.xlu0 %v1513, 111
      %v1590 = vpop.permute.xlu0 %1589
      %v1591 = vsel %vm357, %v1588, %v1590
      %v1592 = vsel %vm357, %v1590, %v1588
      %v1593 = vmul.f32 %v1591, %v364
      %v1594 = vmul.f32 %v1592, %v368
      %1595 = vst [vmem:[#allocation2 + $0x360] sm:$0xff] %v1593
      %1596 = vst [vmem:[#allocation2 + $0x368] sm:$0xff] %v1594
      %s1597 = scalar_lea.vmem %s1, 160
      %v1598 = vld [vmem:[%s1597] sm:$0xff]
      %v1599 = vld [vmem:[%s1597 + $0x8] sm:$0xff]
      %v1600 = vld [vmem:[%s1597 + $0x10] sm:$0xff]
      %v1601 = vld [vmem:[%s1597 + $0x18] sm:$0xff]
      %v1602 = vld [vmem:[#allocation2] sm:$0xff]
      %v1603 = vld [vmem:[#allocation2 + $0x8] sm:$0xff]
      %v1604 = vld [vmem:[#allocation2 + $0x10] sm:$0xff]
      %v1605 = vld [vmem:[#allocation2 + $0x18] sm:$0xff]
      %v1606 = vld [vmem:[#allocation2 + $0x20] sm:$0xff]
      %v1607 = vld [vmem:[#allocation2 + $0x28] sm:$0xff]
      %v1608 = vld [vmem:[#allocation2 + $0x30] sm:$0xff]
      %v1609 = vld [vmem:[#allocation2 + $0x38] sm:$0xff]
      %v1610 = vld [vmem:[#allocation2 + $0x40] sm:$0xff]
      %v1611 = vld [vmem:[#allocation2 + $0x48] sm:$0xff]
      %v1612 = vld [vmem:[#allocation2 + $0x50] sm:$0xff]
      %v1613 = vld [vmem:[#allocation2 + $0x58] sm:$0xff]
      %v1614 = vld [vmem:[#allocation2 + $0x60] sm:$0xff]
      %v1615 = vld [vmem:[#allocation2 + $0x68] sm:$0xff]
      %v1616 = vld [vmem:[#allocation2 + $0x70] sm:$0xff]
      %v1617 = vld [vmem:[#allocation2 + $0x78] sm:$0xff]
      %v1618 = vld [vmem:[#allocation2 + $0x80] sm:$0xff]
      %v1619 = vld [vmem:[#allocation2 + $0x88] sm:$0xff]
      %v1620 = vld [vmem:[#allocation2 + $0x90] sm:$0xff]
      %v1621 = vld [vmem:[#allocation2 + $0x98] sm:$0xff]
      %v1622 = vld [vmem:[#allocation2 + $0xa0] sm:$0xff]
      %v1623 = vld [vmem:[#allocation2 + $0xa8] sm:$0xff]
      %v1624 = vld [vmem:[#allocation2 + $0xb0] sm:$0xff]
      %v1625 = vld [vmem:[#allocation2 + $0xb8] sm:$0xff]
      %v1626 = vld [vmem:[#allocation2 + $0xc0] sm:$0xff]
      %v1627 = vld [vmem:[#allocation2 + $0xc8] sm:$0xff]
      %v1628 = vld [vmem:[#allocation2 + $0xd0] sm:$0xff]
      %v1629 = vld [vmem:[#allocation2 + $0xd8] sm:$0xff]
      %v1630 = vld [vmem:[#allocation2 + $0xe0] sm:$0xff]
      %v1631 = vld [vmem:[#allocation2 + $0xe8] sm:$0xff]
      %v1632 = vld [vmem:[#allocation2 + $0xf0] sm:$0xff]
      %v1633 = vld [vmem:[#allocation2 + $0xf8] sm:$0xff]
      %v1634 = vld [vmem:[#allocation2 + $0x100] sm:$0xff]
      %v1635 = vld [vmem:[#allocation2 + $0x108] sm:$0xff]
      %v1636 = vld [vmem:[#allocation2 + $0x110] sm:$0xff]
      %v1637 = vld [vmem:[#allocation2 + $0x118] sm:$0xff]
      %v1638 = vld [vmem:[#allocation2 + $0x120] sm:$0xff]
      %v1639 = vld [vmem:[#allocation2 + $0x128] sm:$0xff]
      %v1640 = vld [vmem:[#allocation2 + $0x130] sm:$0xff]
      %v1641 = vld [vmem:[#allocation2 + $0x138] sm:$0xff]
      %v1642 = vld [vmem:[#allocation2 + $0x140] sm:$0xff]
      %v1643 = vld [vmem:[#allocation2 + $0x148] sm:$0xff]
      %v1644 = vld [vmem:[#allocation2 + $0x150] sm:$0xff]
      %v1645 = vld [vmem:[#allocation2 + $0x158] sm:$0xff]
      %v1646 = vld [vmem:[#allocation2 + $0x160] sm:$0xff]
      %v1647 = vld [vmem:[#allocation2 + $0x168] sm:$0xff]
      %v1648 = vld [vmem:[#allocation2 + $0x170] sm:$0xff]
      %v1649 = vld [vmem:[#allocation2 + $0x178] sm:$0xff]
      %v1650 = vld [vmem:[#allocation2 + $0x180] sm:$0xff]
      %v1651 = vld [vmem:[#allocation2 + $0x188] sm:$0xff]
      %v1652 = vld [vmem:[#allocation2 + $0x190] sm:$0xff]
      %v1653 = vld [vmem:[#allocation2 + $0x198] sm:$0xff]
      %v1654 = vld [vmem:[#allocation2 + $0x1a0] sm:$0xff]
      %v1655 = vld [vmem:[#allocation2 + $0x1a8] sm:$0xff]
      %v1656 = vld [vmem:[#allocation2 + $0x1b0] sm:$0xff]
      %v1657 = vld [vmem:[#allocation2 + $0x1b8] sm:$0xff]
      %v1658 = vld [vmem:[#allocation2 + $0x1c0] sm:$0xff]
      %v1659 = vld [vmem:[#allocation2 + $0x1c8] sm:$0xff]
      %v1660 = vld [vmem:[#allocation2 + $0x1d0] sm:$0xff]
      %v1661 = vld [vmem:[#allocation2 + $0x1d8] sm:$0xff]
      %v1662 = vld [vmem:[#allocation2 + $0x1e0] sm:$0xff]
      %v1663 = vld [vmem:[#allocation2 + $0x1e8] sm:$0xff]
      %v1664 = vld [vmem:[#allocation2 + $0x1f0] sm:$0xff]
      %v1665 = vld [vmem:[#allocation2 + $0x1f8] sm:$0xff]
      %v1666 = vld [vmem:[#allocation2 + $0x200] sm:$0xff]
      %v1667 = vld [vmem:[#allocation2 + $0x208] sm:$0xff]
      %v1668 = vld [vmem:[#allocation2 + $0x210] sm:$0xff]
      %v1669 = vld [vmem:[#allocation2 + $0x218] sm:$0xff]
      %v1670 = vld [vmem:[#allocation2 + $0x220] sm:$0xff]
      %v1671 = vld [vmem:[#allocation2 + $0x228] sm:$0xff]
      %v1672 = vld [vmem:[#allocation2 + $0x230] sm:$0xff]
      %v1673 = vld [vmem:[#allocation2 + $0x238] sm:$0xff]
      %v1674 = vld [vmem:[#allocation2 + $0x240] sm:$0xff]
      %v1675 = vld [vmem:[#allocation2 + $0x248] sm:$0xff]
      %v1676 = vld [vmem:[#allocation2 + $0x250] sm:$0xff]
      %v1677 = vld [vmem:[#allocation2 + $0x258] sm:$0xff]
      %v1678 = vld [vmem:[#allocation2 + $0x260] sm:$0xff]
      %v1679 = vld [vmem:[#allocation2 + $0x268] sm:$0xff]
      %v1680 = vld [vmem:[#allocation2 + $0x270] sm:$0xff]
      %v1681 = vld [vmem:[#allocation2 + $0x278] sm:$0xff]
      %v1682 = vld [vmem:[#allocation2 + $0x280] sm:$0xff]
      %v1683 = vld [vmem:[#allocation2 + $0x288] sm:$0xff]
      %v1684 = vld [vmem:[#allocation2 + $0x290] sm:$0xff]
      %v1685 = vld [vmem:[#allocation2 + $0x298] sm:$0xff]
      %v1686 = vld [vmem:[#allocation2 + $0x2a0] sm:$0xff]
      %v1687 = vld [vmem:[#allocation2 + $0x2a8] sm:$0xff]
      %v1688 = vld [vmem:[#allocation2 + $0x2b0] sm:$0xff]
      %v1689 = vld [vmem:[#allocation2 + $0x2b8] sm:$0xff]
      %v1690 = vld [vmem:[#allocation2 + $0x2c0] sm:$0xff]
      %v1691 = vld [vmem:[#allocation2 + $0x2c8] sm:$0xff]
      %v1692 = vld [vmem:[#allocation2 + $0x2d0] sm:$0xff]
      %v1693 = vld [vmem:[#allocation2 + $0x2d8] sm:$0xff]
      %v1694 = vld [vmem:[#allocation2 + $0x2e0] sm:$0xff]
      %v1695 = vld [vmem:[#allocation2 + $0x2e8] sm:$0xff]
      %v1696 = vld [vmem:[#allocation2 + $0x2f0] sm:$0xff]
      %v1697 = vld [vmem:[#allocation2 + $0x2f8] sm:$0xff]
      %v1698 = vld [vmem:[#allocation2 + $0x300] sm:$0xff]
      %v1699 = vld [vmem:[#allocation2 + $0x308] sm:$0xff]
      %v1700 = vld [vmem:[#allocation2 + $0x310] sm:$0xff]
      %v1701 = vld [vmem:[#allocation2 + $0x318] sm:$0xff]
      %v1702 = vld [vmem:[#allocation2 + $0x320] sm:$0xff]
      %v1703 = vld [vmem:[#allocation2 + $0x328] sm:$0xff]
      %v1704 = vld [vmem:[#allocation2 + $0x330] sm:$0xff]
      %v1705 = vld [vmem:[#allocation2 + $0x338] sm:$0xff]
      %v1706 = vld [vmem:[#allocation2 + $0x340] sm:$0xff]
      %v1707 = vld [vmem:[#allocation2 + $0x348] sm:$0xff]
      %v1708 = vld [vmem:[#allocation2 + $0x350] sm:$0xff]
      %v1709 = vld [vmem:[#allocation2 + $0x358] sm:$0xff]
      %v1710 = vld [vmem:[#allocation2 + $0x360] sm:$0xff]
      %v1711 = vld [vmem:[#allocation2 + $0x368] sm:$0xff]
      %vm1712 = vcmask 457728
      %v1714 = vsel %vm1712, %v1601, 0
      %1716 = vmatprep.subr.mxu0 %v1603
      %1717 = vmatpush1.msra.mxu0 %v1602
      %1718 = vmatprep.subr.mxu0 %v1605
      %1719 = vmatpush1.msra.mxu0 %v1604
      %1720 = vmatprep.subr.mxu0 %v1607
      %1721 = vmatpush1.msra.mxu0 %v1606
      %1722 = vmatprep.subr.mxu0 %v1609
      %1723 = vmatpush1.msra.mxu0 %v1608
      %1724 = vmatprep.subr.mxu0 %v1611
      %1725 = vmatpush1.msra.mxu0 %v1610
      %1726 = vmatprep.subr.mxu0 %v1613
      %1727 = vmatpush1.msra.mxu0 %v1612
      %1728 = vmatprep.subr.mxu0 %v1615
      %1729 = vmatpush1.msra.mxu0 %v1614
      %1730 = vmatprep.subr.mxu0 %v1617
      %1731 = vmatpush1.msra.mxu0 %v1616
      %1732 = vmatprep.subr.mxu0 %v1619
      %1733 = vmatpush1.msra.mxu0 %v1618
      %1734 = vmatprep.subr.mxu0 %v1621
      %1735 = vmatpush1.msra.mxu0 %v1620
      %1736 = vmatprep.subr.mxu0 %v1623
      %1737 = vmatpush1.msra.mxu0 %v1622
      %1738 = vmatprep.subr.mxu0 %v1625
      %1739 = vmatpush1.msra.mxu0 %v1624
      %1740 = vmatprep.subr.mxu0 %v1627
      %1741 = vmatpush1.msra.mxu0 %v1626
      %1742 = vmatprep.subr.mxu0 %v1629
      %1743 = vmatpush1.msra.mxu0 %v1628
      %1744 = vmatprep.subr.mxu0 %v1631
      %1745 = vmatpush1.msra.mxu0 %v1630
      %1746 = vmatprep.subr.mxu0 %v1633
      %1747 = vmatpush1.msra.mxu0 %v1632
      %1748 = vmatprep.subr.mxu0 %v1635
      %1749 = vmatpush1.msra.mxu0 %v1634
      %1750 = vmatprep.subr.mxu0 %v1637
      %1751 = vmatpush1.msra.mxu0 %v1636
      %1752 = vmatprep.subr.mxu0 %v1639
      %1753 = vmatpush1.msra.mxu0 %v1638
      %1754 = vmatprep.subr.mxu0 %v1641
      %1755 = vmatpush1.msra.mxu0 %v1640
      %1756 = vmatprep.subr.mxu0 %v1643
      %1757 = vmatpush1.msra.mxu0 %v1642
      %1758 = vmatprep.subr.mxu0 %v1645
      %1759 = vmatpush1.msra.mxu0 %v1644
      %1760 = vmatprep.subr.mxu0 %v1647
      %1761 = vmatpush1.msra.mxu0 %v1646
      %1762 = vmatprep.subr.mxu0 %v1649
      %1763 = vmatpush1.msra.mxu0 %v1648
      %1764 = vmatprep.subr.mxu0 %v1651
      %1765 = vmatpush1.msra.mxu0 %v1650
      %1766 = vmatprep.subr.mxu0 %v1653
      %1767 = vmatpush1.msra.mxu0 %v1652
      %1768 = vmatprep.subr.mxu0 %v1655
      %1769 = vmatpush1.msra.mxu0 %v1654
      %1770 = vmatprep.subr.mxu0 %v1657
      %1771 = vmatpush1.msra.mxu0 %v1656
      %1772 = vmatprep.subr.mxu0 %v1659
      %1773 = vmatpush1.msra.mxu0 %v1658
      %1774 = vmatprep.subr.mxu0 %v1661
      %1775 = vmatpush1.msra.mxu0 %v1660
      %1776 = vmatprep.subr.mxu0 %v1663
      %1777 = vmatpush1.msra.mxu0 %v1662
      %1778 = vmatprep.subr.mxu0 %v1665
      %1779 = vmatpush1.msra.mxu0 %v1664
      %1780 = vmatprep.mubr.f32.mxu0 %v1599
      %1781 = vmatmul.mubr.f32.gmra.mrb[0].mxu0 %v1598
      %v1782 = vpop.f32.mrb[0].mxu0
      %v1783 = vadd.f32 0.0, %v1782
      %v1784 = vpop.f32.mrb[0].mxu0
      %v1785 = vadd.f32 0.0, %v1784
      %1786 = vdwg.mxu0
      %1787 = vmatprep.subr.mxu0 %v1667
      %1788 = vmatpush1.msra.mxu0 %v1666
      %1789 = vmatprep.subr.mxu0 %v1669
      %1790 = vmatpush1.msra.mxu0 %v1668
      %1791 = vmatprep.subr.mxu0 %v1671
      %1792 = vmatpush1.msra.mxu0 %v1670
      %1793 = vmatprep.subr.mxu0 %v1673
      %1794 = vmatpush1.msra.mxu0 %v1672
      %1795 = vmatprep.subr.mxu0 %v1675
      %1796 = vmatpush1.msra.mxu0 %v1674
      %1797 = vmatprep.subr.mxu0 %v1677
      %1798 = vmatpush1.msra.mxu0 %v1676
      %1799 = vmatprep.subr.mxu0 %v1679
      %1800 = vmatpush1.msra.mxu0 %v1678
      %1801 = vmatprep.subr.mxu0 %v1681
      %1802 = vmatpush1.msra.mxu0 %v1680
      %1803 = vmatprep.subr.mxu0 %v1683
      %1804 = vmatpush1.msra.mxu0 %v1682
      %1805 = vmatprep.subr.mxu0 %v1685
      %1806 = vmatpush1.msra.mxu0 %v1684
      %1807 = vmatprep.subr.mxu0 %v1687
      %1808 = vmatpush1.msra.mxu0 %v1686
      %1809 = vmatprep.subr.mxu0 %v1689
      %1810 = vmatpush1.msra.mxu0 %v1688
      %1811 = vmatprep.subr.mxu0 %v1691
      %1812 = vmatpush1.msra.mxu0 %v1690
      %1813 = vmatprep.subr.mxu0 %v1693
      %1814 = vmatpush1.msra.mxu0 %v1692
      %1815 = vmatprep.subr.mxu0 %v1695
      %1816 = vmatpush1.msra.mxu0 %v1694
      %1817 = vmatprep.subr.mxu0 %v1697
      %1818 = vmatpush1.msra.mxu0 %v1696
      %1819 = vmatprep.subr.mxu0 %v1699
      %1820 = vmatpush1.msra.mxu0 %v1698
      %1821 = vmatprep.subr.mxu0 %v1701
      %1822 = vmatpush1.msra.mxu0 %v1700
      %1823 = vmatprep.subr.mxu0 %v1703
      %1824 = vmatpush1.msra.mxu0 %v1702
      %1825 = vmatprep.subr.mxu0 %v1705
      %1826 = vmatpush1.msra.mxu0 %v1704
      %1827 = vmatprep.subr.mxu0 %v1707
      %1828 = vmatpush1.msra.mxu0 %v1706
      %1829 = vmatprep.subr.mxu0 %v1709
      %1830 = vmatpush1.msra.mxu0 %v1708
      %1831 = vmatprep.subr.mxu0 %v1711
      %1832 = vmatpush1.msra.mxu0 %v1710
      %1833 = vmatprep.subr.mxu0 0.0
      %1834 = vmatpush1.msra.mxu0 0.0
      %1835 = vmatprep.subr.mxu0 0.0
      %1836 = vmatpush1.msra.mxu0 0.0
      %1837 = vmatprep.subr.mxu0 0.0
      %1838 = vmatpush1.msra.mxu0 0.0
      %1839 = vmatprep.subr.mxu0 0.0
      %1840 = vmatpush1.msra.mxu0 0.0
      %1841 = vmatprep.subr.mxu0 0.0
      %1842 = vmatpush1.msra.mxu0 0.0
      %1843 = vmatprep.subr.mxu0 0.0
      %1844 = vmatpush1.msra.mxu0 0.0
      %1845 = vmatprep.subr.mxu0 0.0
      %1846 = vmatpush1.msra.mxu0 0.0
      %1847 = vmatprep.subr.mxu0 0.0
      %1848 = vmatpush1.msra.mxu0 0.0
      %1849 = vmatprep.subr.mxu0 0.0
      %1850 = vmatpush1.msra.mxu0 0.0
      %1851 = vmatprep.mubr.f32.mxu0 %v1714
      %1852 = vmatmul.mubr.f32.gmra.mrb[0].mxu0 %v1600
      %v1853 = vpop.f32.mrb[0].mxu0
      %v1854 = vadd.f32 %v1783, %v1853
      %v1855 = vpop.f32.mrb[0].mxu0
      %v1856 = vadd.f32 %v1785, %v1855
      %1857 = vdwg.mxu0
      %1858 = vst [vmem:[%s170] sm:$0xff] %v1854
      %1859 = vst [vmem:[%s170 + $0x8] sm:$0xff] %v1856
      %p1860 = scmp.lt.s32.totalorder %s14, 1
      %s1861 = scalar_select %p1860, %s14, 1
      %s1862 = smul.addr %s1861, 2
      %s1863 = smul.addr %s1862, 8
      %s1864 = scalar_lea.vmem %s3, %s1863
      // Predicated region
      $region33: #{one_block_forward.1} parent=31 // pred_check
        %p1865 = pneg %p100
      $region34: #{one_block_forward.1} parent=31 // pred_check_branch
        %1867 = sbr.rel (%p1865) target = $region36
      $region35: #{one_block_forward.1} parent=31 // pred_region
        _
      $region36: #{one_block_forward.1} parent=31 // pred_fallthru
        _
    $region32: #{one_block_forward.1} parent=5 // pred_fallthru
      _
    %p1868 = scmp.le.s32.totalorder 2, %s9
    // Predicated region
    $region37: #{one_block_forward.1} parent=5 // pred_check
      %p1869 = pneg %p1868
    $region38: #{one_block_forward.1} parent=5 // pred_check_branch
      %1871 = sbr.rel (%p1869) target = $region40
    $region39: #{one_block_forward.1} parent=5 // pred_region
      %s1872 = ssub.s32 %s9, 2
      // Predicated region
      $region41: #{one_block_forward.1} parent=39 // pred_check
        %p1873 = pneg %p106
      $region42: #{one_block_forward.1} parent=39 // pred_check_branch
        %1875 = sbr.rel (%p1873) target = $region44
      $region43: #{one_block_forward.1} parent=39 // pred_region
        %p1876 = scmp.lt.s32.totalorder %s15, 1
        %s1877 = scalar_select %p1876, %s15, 1
        %s1878 = smul.addr %s1877, 2
        %s1879 = smul.addr %s1878, 8
        %s1880 = scalar_lea.vmem %s3, %s1879
      $region44: #{one_block_forward.1} parent=39 // pred_fallthru
        _
    $region40: #{one_block_forward.1} parent=5 // pred_fallthru
      _
  $region6: #{one_block_forward.1} parent=0 // loop_footer
    %s13 = sadd.s32 1, %s9
  $region7: #{one_block_forward.1} parent=0 // loop_footer_branch
    %8 = sbr.rel target = $region3
  $region8: #{one_block_forward.1} parent=0 // loop_exit
    _

</llo_original>
